<compile_context>
chip_gen: v7x
topology: tpu7x:2x2x1
jax: 0.10.0
libtpu: 0.0.40
codegen_flags: <defaults>
</compile_context>

<pallas_src>
import jax
import jax.numpy as jnp
from jax.experimental import pallas as pl
from jax.experimental.pallas import tpu as pltpu

IN_DIM = 784
H1, H2, H3 = 500, 50, 128       # original hidden sizes (cut_layer = 50)
H1P, H2P = 512, 128             # lane-dense padded hidden sizes
OUT_DIM = 10                    # real number of classes
OUT_PAD = 128                   # lane-dense padded output width


def _cdiv(a, b):
    return -(-a // b)


def _round_up(a, m):
    return _cdiv(a, m) * m


def splitnn_kernel(x_ref,
                   w1_ref, b1_ref,
                   w2_ref, b2_ref,
                   w3_ref, b3_ref,
                   w4_ref, b4_ref,
                   o_ref):
    # x arrives as bf16; all matmuls accumulate in f32 (preferred_element_type),
    # all VPU/EUP math (bias, ReLU, log-softmax) stays f32.
    x = x_ref[...]                                              # [TB, 784] bf16

    # ---- first_part ----
    h1 = jnp.dot(x, w1_ref[...], preferred_element_type=jnp.float32) + b1_ref[...]
    h1 = jnp.maximum(h1, 0.0)                                   # [TB, 512] f32

    h2 = jnp.dot(h1.astype(jnp.bfloat16), w2_ref[...],
                 preferred_element_type=jnp.float32) + b2_ref[...]
    h2 = jnp.maximum(h2, 0.0)                                   # [TB, 128] f32

    # ---- second_part ----
    h3 = jnp.dot(h2.astype(jnp.bfloat16), w3_ref[...],
                 preferred_element_type=jnp.float32) + b3_ref[...]
    h3 = jnp.maximum(h3, 0.0)                                   # [TB, 128] f32

    z = jnp.dot(h3.astype(jnp.bfloat16), w4_ref[...],
                preferred_element_type=jnp.float32) + b4_ref[...]  # [TB, 128] f32

    # Mask the zero-padded logit columns out of the softmax (Python literal,
    # not a captured jnp constant).
    col = jax.lax.broadcasted_iota(jnp.int32, z.shape, 1)
    z = jnp.where(col < OUT_DIM, z, -1e30)

    # Numerically-stable LogSoftmax along dim=1.
    z_max = jnp.max(z, axis=1, keepdims=True)
    z_shift = z - z_max
    lse = jnp.log(jnp.sum(jnp.exp(z_shift), axis=1, keepdims=True))
    o_ref[...] = (z_shift - lse).astype(o_ref.dtype)


def prepare_params(params):
    """One-time preprocessing: bf16 cast + lane-dense zero padding.

    Call once (e.g. at model setup), NOT inside the per-step forward.
    """
    (w1, b1, w2, b2, w3, b3, w4, b4) = params

    w1p = jnp.zeros((IN_DIM, H1P), jnp.bfloat16).at[:, :H1].set(w1.astype(jnp.bfloat16))
    b1p = jnp.zeros((1, H1P), jnp.float32).at[:, :H1].set(b1)

    w2p = jnp.zeros((H1P, H2P), jnp.bfloat16).at[:H1, :H2].set(w2.astype(jnp.bfloat16))
    b2p = jnp.zeros((1, H2P), jnp.float32).at[:, :H2].set(b2)

    w3p = jnp.zeros((H2P, H3), jnp.bfloat16).at[:H2, :].set(w3.astype(jnp.bfloat16))
    b3p = b3.astype(jnp.float32)                         # (1, 128) already aligned

    w4p = jnp.zeros((H3, OUT_PAD), jnp.bfloat16).at[:, :OUT_DIM].set(w4.astype(jnp.bfloat16))
    b4p = jnp.zeros((1, OUT_PAD), jnp.float32).at[:, :OUT_DIM].set(b4)

    return (w1p, b1p, w2p, b2p, w3p, b3p, w4p, b4p)


def _tile_plan(B):
    """Pad-minimizing batch tiling with an even grid length (v7x megacore)."""
    n_steps = _cdiv(B, 512)
    n_steps = n_steps + (n_steps & 1)          # round up to even, >= 2
    tb = _round_up(_cdiv(B, n_steps), 16)      # 16-row align (bf16 sublane packing)
    return tb, n_steps


@jax.jit
def splitnn_forward(x, prepared_params):
    (w1p, b1p, w2p, b2p, w3p, b3p, w4p, b4p) = prepared_params
    B = x.shape[0]

    TB, n_steps = _tile_plan(B)
    B_pad = TB * n_steps

    # Stream activations in bf16 (halves x HBM traffic; matches MXU input dtype).
    x = x.astype(jnp.bfloat16)
    if B_pad != B:
        x = jnp.pad(x, ((0, B_pad - B), (0, 0)))

    x_spec = pl.BlockSpec((TB, IN_DIM), lambda i: (i, 0))
    out_spec = pl.BlockSpec((TB, OUT_PAD), lambda i: (i, 0))

    def resident(arr):
        # Constant block index -> stays VMEM-resident, DMA'd once.
        return pl.BlockSpec(arr.shape, lambda i: (0, 0))

    out = pl.pallas_call(
        splitnn_kernel,
        out_shape=jax.ShapeDtypeStruct((B_pad, OUT_PAD), jnp.float32),
        grid_spec=pltpu.PrefetchScalarGridSpec(
            num_scalar_prefetch=0,
            grid=(n_steps,),
            in_specs=[
                x_spec,
                resident(w1p), resident(b1p),
                resident(w2p), resident(b2p),
                resident(w3p), resident(b3p),
                resident(w4p), resident(b4p),
            ],
            out_specs=out_spec,
        ),
        compiler_params=pltpu.CompilerParams(
            dimension_semantics=("parallel",),   # megacore sharding on v7x
            vmem_limit_bytes=16 << 20,           # working set is a few MiB
        ),
    )(x, w1p, b1p, w2p, b2p, w3p, b3p, w4p, b4p)

    return out[:B, :OUT_DIM]


def init_params(key):
    """Deterministic PyTorch-style (uniform +/- 1/sqrt(fan_in)) init, f32."""
    dims = [(IN_DIM, H1), (H1, H2), (H2, H3), (H3, OUT_DIM)]
    params = []
    for (fan_in, fan_out) in dims:
        key, kw, kb = jax.random.split(key, 3)
        bound = 1.0 / jnp.sqrt(fan_in)
        w = jax.random.uniform(kw, (fan_in, fan_out), jnp.float32, -bound, bound)
        b = jax.random.uniform(kb, (1, fan_out), jnp.float32, -bound, bound)
        params.extend([w, b])
    return tuple(params)


def reference_forward(x, params):
    """Same bf16-input / f32-accumulate recipe as the kernel, in plain JAX."""
    (w1, b1, w2, b2, w3, b3, w4, b4) = params

    def lin(h, w, b):
        return jnp.dot(h.astype(jnp.bfloat16), w.astype(jnp.bfloat16),
                       preferred_element_type=jnp.float32) + b

    h = jnp.maximum(lin(x, w1, b1), 0.0)
    h = jnp.maximum(lin(h, w2, b2), 0.0)
    h = jnp.maximum(lin(h, w3, b3), 0.0)
    z = lin(h, w4, b4)
    return jax.nn.log_softmax(z, axis=1)


if __name__ == "__main__":
    key = jax.random.PRNGKey(0)
    key, kx = jax.random.split(key)

    B = 8
    x = jax.random.normal(kx, (B, IN_DIM), jnp.float32)
    params = init_params(key)
    prepared = prepare_params(params)   # one-time: bf16 cast + padding

    out = splitnn_forward(x, prepared)
    out = jax.block_until_ready(out)

    ref = reference_forward(x, params)
    assert out.shape == (B, OUT_DIM), out.shape
    assert jnp.all(jnp.isfinite(out)), "non-finite output"
    assert jnp.allclose(out, ref, atol=2e-3, rtol=2e-3), "mismatch vs reference"

    print("KERNEL_OK")
</pallas_src>

<mosaic_0001>
module attributes {stable_mosaic.version = 11 : i64} {
  func.func @splitnn_kernel(%arg0: i32, %arg1: memref<16x784xbf16, #tpu.memory_space<vmem>>, %arg2: memref<784x512xbf16, #tpu.memory_space<vmem>>, %arg3: memref<1x512xf32, #tpu.memory_space<vmem>>, %arg4: memref<512x128xbf16, #tpu.memory_space<vmem>>, %arg5: memref<1x128xf32, #tpu.memory_space<vmem>>, %arg6: memref<128x128xbf16, #tpu.memory_space<vmem>>, %arg7: memref<1x128xf32, #tpu.memory_space<vmem>>, %arg8: memref<128x128xbf16, #tpu.memory_space<vmem>>, %arg9: memref<1x128xf32, #tpu.memory_space<vmem>>, %arg10: memref<16x128xf32, #tpu.memory_space<vmem>>) attributes {dimension_semantics = [#tpu.dimension_semantics<parallel>], iteration_bounds = array<i64: 2>, scalar_prefetch = 0 : i64, scratch_operands = 0 : i64, tpu.core_type = #tpu.core_type<tc>, window_params = [{transform_indices = @transform_0, window_bounds = array<i64: 16, 784>}, {pipeline_mode = #tpu.pipeline_mode<synchronous>, transform_indices = @transform_1, window_bounds = array<i64: 784, 512>}, {pipeline_mode = #tpu.pipeline_mode<synchronous>, transform_indices = @transform_2, window_bounds = array<i64: 1, 512>}, {pipeline_mode = #tpu.pipeline_mode<synchronous>, transform_indices = @transform_3, window_bounds = array<i64: 512, 128>}, {pipeline_mode = #tpu.pipeline_mode<synchronous>, transform_indices = @transform_4, window_bounds = array<i64: 1, 128>}, {pipeline_mode = #tpu.pipeline_mode<synchronous>, transform_indices = @transform_5, window_bounds = array<i64: 128, 128>}, {pipeline_mode = #tpu.pipeline_mode<synchronous>, transform_indices = @transform_6, window_bounds = array<i64: 1, 128>}, {pipeline_mode = #tpu.pipeline_mode<synchronous>, transform_indices = @transform_7, window_bounds = array<i64: 128, 128>}, {pipeline_mode = #tpu.pipeline_mode<synchronous>, transform_indices = @transform_8, window_bounds = array<i64: 1, 128>}, {transform_indices = @transform_9, window_bounds = array<i64: 16, 128>}]} {
    %c0 = arith.constant 0 : index
    %c0_0 = arith.constant 0 : index
    %0 = vector.load %arg1[%c0, %c0_0] : memref<16x784xbf16, #tpu.memory_space<vmem>>, vector<16x784xbf16>
    %c0_1 = arith.constant 0 : index
    %c0_2 = arith.constant 0 : index
    %1 = vector.load %arg2[%c0_1, %c0_2] : memref<784x512xbf16, #tpu.memory_space<vmem>>, vector<784x512xbf16>
    %cst = arith.constant dense<0.000000e+00> : vector<16x512xf32>
    %2 = tpu.matmul %0, %1, %cst {dimension_numbers = #tpu.dot_dimension_numbers<[1], [0], [0], [1], [0, 0, 1, 1], [], []>} : vector<16x784xbf16>, vector<784x512xbf16>, vector<16x512xf32> -> vector<16x512xf32>
    %c0_3 = arith.constant 0 : index
    %c0_4 = arith.constant 0 : index
    %3 = vector.load %arg3[%c0_3, %c0_4] : memref<1x512xf32, #tpu.memory_space<vmem>>, vector<1x512xf32>
    %4 = vector.broadcast %3 : vector<1x512xf32> to vector<16x512xf32>
    %5 = arith.addf %2, %4 : vector<16x512xf32>
    %cst_5 = arith.constant 0.000000e+00 : f32
    %6 = vector.broadcast %cst_5 : f32 to vector<16x512xf32>
    %7 = arith.maximumf %5, %6 : vector<16x512xf32>
    %8 = arith.truncf %7 : vector<16x512xf32> to vector<16x512xbf16>
    %c0_6 = arith.constant 0 : index
    %c0_7 = arith.constant 0 : index
    %9 = vector.load %arg4[%c0_6, %c0_7] : memref<512x128xbf16, #tpu.memory_space<vmem>>, vector<512x128xbf16>
    %cst_8 = arith.constant dense<0.000000e+00> : vector<16x128xf32>
    %10 = tpu.matmul %8, %9, %cst_8 {dimension_numbers = #tpu.dot_dimension_numbers<[1], [0], [0], [1], [0, 0, 1, 1], [], []>} : vector<16x512xbf16>, vector<512x128xbf16>, vector<16x128xf32> -> vector<16x128xf32>
    %c0_9 = arith.constant 0 : index
    %c0_10 = arith.constant 0 : index
    %11 = vector.load %arg5[%c0_9, %c0_10] : memref<1x128xf32, #tpu.memory_space<vmem>>, vector<1x128xf32>
    %12 = vector.broadcast %11 : vector<1x128xf32> to vector<16x128xf32>
    %13 = arith.addf %10, %12 : vector<16x128xf32>
    %cst_11 = arith.constant 0.000000e+00 : f32
    %14 = vector.broadcast %cst_11 : f32 to vector<16x128xf32>
    %15 = arith.maximumf %13, %14 : vector<16x128xf32>
    %16 = arith.truncf %15 : vector<16x128xf32> to vector<16x128xbf16>
    %c0_12 = arith.constant 0 : index
    %c0_13 = arith.constant 0 : index
    %17 = vector.load %arg6[%c0_12, %c0_13] : memref<128x128xbf16, #tpu.memory_space<vmem>>, vector<128x128xbf16>
    %cst_14 = arith.constant dense<0.000000e+00> : vector<16x128xf32>
    %18 = tpu.matmul %16, %17, %cst_14 {dimension_numbers = #tpu.dot_dimension_numbers<[1], [0], [0], [1], [0, 0, 1, 1], [], []>} : vector<16x128xbf16>, vector<128x128xbf16>, vector<16x128xf32> -> vector<16x128xf32>
    %c0_15 = arith.constant 0 : index
    %c0_16 = arith.constant 0 : index
    %19 = vector.load %arg7[%c0_15, %c0_16] : memref<1x128xf32, #tpu.memory_space<vmem>>, vector<1x128xf32>
    %20 = vector.broadcast %19 : vector<1x128xf32> to vector<16x128xf32>
    %21 = arith.addf %18, %20 : vector<16x128xf32>
    %cst_17 = arith.constant 0.000000e+00 : f32
    %22 = vector.broadcast %cst_17 : f32 to vector<16x128xf32>
    %23 = arith.maximumf %21, %22 : vector<16x128xf32>
    %24 = arith.truncf %23 : vector<16x128xf32> to vector<16x128xbf16>
    %c0_18 = arith.constant 0 : index
    %c0_19 = arith.constant 0 : index
    %25 = vector.load %arg8[%c0_18, %c0_19] : memref<128x128xbf16, #tpu.memory_space<vmem>>, vector<128x128xbf16>
    %cst_20 = arith.constant dense<0.000000e+00> : vector<16x128xf32>
    %26 = tpu.matmul %24, %25, %cst_20 {dimension_numbers = #tpu.dot_dimension_numbers<[1], [0], [0], [1], [0, 0, 1, 1], [], []>} : vector<16x128xbf16>, vector<128x128xbf16>, vector<16x128xf32> -> vector<16x128xf32>
    %c0_21 = arith.constant 0 : index
    %c0_22 = arith.constant 0 : index
    %27 = vector.load %arg9[%c0_21, %c0_22] : memref<1x128xf32, #tpu.memory_space<vmem>>, vector<1x128xf32>
    %28 = vector.broadcast %27 : vector<1x128xf32> to vector<16x128xf32>
    %29 = arith.addf %26, %28 : vector<16x128xf32>
    %30 = tpu.iota {dimensions = array<i32: 1>} : vector<16x128xi32>
    %c10_i32 = arith.constant 10 : i32
    %31 = vector.broadcast %c10_i32 : i32 to vector<16x128xi32>
    %32 = arith.cmpi slt, %30, %31 : vector<16x128xi32>
    %cst_23 = arith.constant -1.000000e+30 : f32
    %33 = vector.broadcast %cst_23 : f32 to vector<16x128xf32>
    %34 = arith.select %32, %29, %33 : vector<16x128xi1>, vector<16x128xf32>
    %cst_24 = arith.constant dense<0xFF800000> : vector<16xf32>
    %35 = vector.multi_reduction <maximumf>, %34, %cst_24 [1] : vector<16x128xf32> to vector<16xf32>
    %36 = vector.shape_cast %35 : vector<16xf32> to vector<16x1xf32>
    %37 = vector.broadcast %36 : vector<16x1xf32> to vector<16x128xf32>
    %38 = arith.subf %34, %37 : vector<16x128xf32>
    %39 = math.exp %38 : vector<16x128xf32>
    %cst_25 = arith.constant dense<0.000000e+00> : vector<16xf32>
    %40 = vector.multi_reduction <add>, %39, %cst_25 [1] : vector<16x128xf32> to vector<16xf32>
    %41 = vector.shape_cast %40 : vector<16xf32> to vector<16x1xf32>
    %42 = math.log %41 : vector<16x1xf32>
    %43 = vector.broadcast %42 : vector<16x1xf32> to vector<16x128xf32>
    %44 = arith.subf %38, %43 : vector<16x128xf32>
    %c0_26 = arith.constant 0 : index
    %c0_27 = arith.constant 0 : index
    %45 = vector.load %arg10[%c0_26, %c0_27] : memref<16x128xf32, #tpu.memory_space<vmem>>, vector<16x128xf32>
    tpu.vector_store %arg10[%c0_26, %c0_27], %44 {strides = array<i32>} : memref<16x128xf32, #tpu.memory_space<vmem>>, vector<16x128xf32>,
    return
  }
  func.func @transform_0(%arg0: i32) -> (i32, i32) {
    %c0_i32 = arith.constant 0 : i32
    %c0_i32_0 = arith.constant 0 : i32
    return %arg0, %c0_i32 : i32, i32
  }
  func.func @transform_1(%arg0: i32) -> (i32, i32) {
    %c0_i32 = arith.constant 0 : i32
    %c0_i32_0 = arith.constant 0 : i32
    %c0_i32_1 = arith.constant 0 : i32
    return %c0_i32, %c0_i32_0 : i32, i32
  }
  func.func @transform_2(%arg0: i32) -> (i32, i32) {
    %c0_i32 = arith.constant 0 : i32
    %c0_i32_0 = arith.constant 0 : i32
    %c0_i32_1 = arith.constant 0 : i32
    return %c0_i32, %c0_i32_0 : i32, i32
  }
  func.func @transform_3(%arg0: i32) -> (i32, i32) {
    %c0_i32 = arith.constant 0 : i32
    %c0_i32_0 = arith.constant 0 : i32
    %c0_i32_1 = arith.constant 0 : i32
    return %c0_i32, %c0_i32_0 : i32, i32
  }
  func.func @transform_4(%arg0: i32) -> (i32, i32) {
    %c0_i32 = arith.constant 0 : i32
    %c0_i32_0 = arith.constant 0 : i32
    %c0_i32_1 = arith.constant 0 : i32
    return %c0_i32, %c0_i32_0 : i32, i32
  }
  func.func @transform_5(%arg0: i32) -> (i32, i32) {
    %c0_i32 = arith.constant 0 : i32
    %c0_i32_0 = arith.constant 0 : i32
    %c0_i32_1 = arith.constant 0 : i32
    return %c0_i32, %c0_i32_0 : i32, i32
  }
  func.func @transform_6(%arg0: i32) -> (i32, i32) {
    %c0_i32 = arith.constant 0 : i32
    %c0_i32_0 = arith.constant 0 : i32
    %c0_i32_1 = arith.constant 0 : i32
    return %c0_i32, %c0_i32_0 : i32, i32
  }
  func.func @transform_7(%arg0: i32) -> (i32, i32) {
    %c0_i32 = arith.constant 0 : i32
    %c0_i32_0 = arith.constant 0 : i32
    %c0_i32_1 = arith.constant 0 : i32
    return %c0_i32, %c0_i32_0 : i32, i32
  }
  func.func @transform_8(%arg0: i32) -> (i32, i32) {
    %c0_i32 = arith.constant 0 : i32
    %c0_i32_0 = arith.constant 0 : i32
    %c0_i32_1 = arith.constant 0 : i32
    return %c0_i32, %c0_i32_0 : i32, i32
  }
  func.func @transform_9(%arg0: i32) -> (i32, i32) {
    %c0_i32 = arith.constant 0 : i32
    %c0_i32_0 = arith.constant 0 : i32
    return %arg0, %c0_i32 : i32, i32
  }
}

</mosaic_0001>

<llo_original>
// kernel: splitnn_forward.1
$region0: #{splitnn_forward.1}
  #allocation0 [shape = 'u32[]', space=smem, size = 0x4, offset = 0x4, fixed_abs, tag = 'smem constant byte address 0x4 - core index']
  #allocation1 [shape = 'u32[144,128]{1,0:T(1,128)}', space=vmem, size = 0x12000, scoped, tag = 'internal scratch']
  %s0 = inlined_call_operand.vmem [shape: bf16[32,784], index: 0, kind: input, shape index: {}]
  %s1 = inlined_call_operand.hbm [shape: bf16[784,512], index: 1, kind: input, shape index: {}]
  %s2 = inlined_call_operand.vmem [shape: f32[1,512], index: 2, kind: input, shape index: {}]
  %s3 = inlined_call_operand.hbm [shape: bf16[512,128], index: 3, kind: input, shape index: {}]
  %s4 = inlined_call_operand.vmem [shape: f32[1,128], index: 4, kind: input, shape index: {}]
  %s5 = inlined_call_operand.vmem [shape: bf16[128,128], index: 5, kind: input, shape index: {}]
  %s6 = inlined_call_operand.vmem [shape: f32[1,128], index: 6, kind: input, shape index: {}]
  %s7 = inlined_call_operand.vmem [shape: bf16[128,128], index: 7, kind: input, shape index: {}]
  %s8 = inlined_call_operand.vmem [shape: f32[1,128], index: 8, kind: input, shape index: {}]
  %s9 = inlined_call_operand.vmem [shape: f32[32,128], index: 9, kind: output, shape index: {}]
  %s10 = sld [smem:[#allocation0]]
  $region77: #{splitnn_forward.1} parent=0
    _
  %s12 = ssub.s32 1, %s10
  %s13 = scalar_select 0, %s12, %s10
  $region1: #{splitnn_forward.1} parent=0
    #allocation2 [shape = 'u8[802816]{0}', space=vmem, size = 0xc4000, scoped, tag = 'input window, operand 1, single buffered']
    #allocation3 [shape = 's32[2]{0}', space=sflag, size = 0x8, scoped, tag = 'scoped memory for splitnn_forward.1']
    #allocation4 [shape = 'u8[131072]{0}', space=vmem, size = 0x20000, scoped, tag = 'input window, operand 3, single buffered']
    #allocation5 [shape = 's32[1]{0}', space=sflag, size = 0x4, scoped, tag = 'scoped memory for splitnn_forward.1']
    %14 = vsyncpa [#allocation3], 0
    %15 = vsyncpa [#allocation5], 0
    loop: start=0, step=1, limit=4
    $region2: #{splitnn_forward.1} parent=1 // loop_pre_header
      _
    $region3: #{splitnn_forward.1} parent=1 // loop_header
      %s17 = sphi 0, %s21
      %p18 = scmp.ge.s32.totalorder %s17, 4
      %s27 = sphi 0, %s29
      %s30 = sphi 0, %s27
      %s31 = sphi 0, %s30
      %s47 = sphi 0, %s31
      %s51 = sphi 0, %s51
      %s53 = sphi 0, %s51
      %s54 = sphi 0, %s53
      %s68 = sphi 0, %s54
      %s72 = sphi 0, %s72
      %s74 = sphi 0, %s72
      %s75 = sphi 0, %s74
      %s89 = sphi 0, %s75
      %s93 = sphi 0, %s93
      %s95 = sphi 0, %s93
      %s96 = sphi 0, %s95
      %s110 = sphi 0, %s96
      %s114 = sphi 0, %s114
      %s116 = sphi 0, %s114
      %s117 = sphi 0, %s116
      %s131 = sphi 0, %s117
      %s135 = sphi 0, %s135
      %s137 = sphi 0, %s135
      %s138 = sphi 0, %s137
      %s152 = sphi 0, %s138
      %s156 = sphi 0, %s156
      %s158 = sphi 0, %s156
      %s159 = sphi 0, %s158
      %s173 = sphi 0, %s159
      %s177 = sphi 0, %s177
      %s179 = sphi 0, %s177
      %s180 = sphi 0, %s179
      %s194 = sphi 0, %s180
      %s198 = sphi 0, %s198
      %s200 = sphi 0, %s198
      %s201 = sphi 0, %s200
      %s215 = sphi 0, %s201
      %s221 = sphi 0, %s223
      %s224 = sphi 0, %s221
      %s225 = sphi 0, %s224
      %s241 = sphi 0, %s225
    $region4: #{splitnn_forward.1} parent=1 // loop_header_branch
      %20 = sbr.rel (%p18) target = $region8
    $region5: #{splitnn_forward.1} parent=1 // loop_body
      %s22 = ssub.s32 %s17, 1
      %s23 = ssub.s32 %s17, 2
      %s24 = sadd.s32 %s17, 1
      %s25 = ssub.s32 %s17, %s24
      %p26 = scmp.eq.s32.totalorder %s25, 0
      %s28 = sadd.s32 %s27, 1
      %s29 = scalar_select %p26, %s27, %s28
      %p32 = pneg %p26
      %p33 = scmp.eq.s32.totalorder %s17, 1
      %p34 = por %p32, %p33
      %p35 = scmp.ne.s32.totalorder %s27, %s30
      %p36 = scmp.eq.s32.totalorder %s17, 0
      %p37 = por %p35, %p36
      %p38 = scmp.ne.s32.totalorder %s27, %s30
      %p39 = scmp.eq.s32.totalorder %s22, 1
      %p40 = por %p38, %p39
      %p41 = scmp.ne.s32.totalorder %s30, %s31
      %p42 = scmp.eq.s32.totalorder %s22, 0
      %p43 = por %p41, %p42
      %p44 = scmp.ne.s32.totalorder %s30, %s31
      %p45 = scmp.eq.s32.totalorder %s23, 1
      %p46 = por %p44, %p45
      %p48 = scmp.ne.s32.totalorder %s31, %s47
      %p49 = scmp.eq.s32.totalorder %s23, 0
      %p50 = por %p48, %p49
      %s52 = sadd.s32 %s51, 1
      %p55 = scmp.eq.s32.totalorder %s17, 1
      %p56 = scmp.ne.s32.totalorder %s51, %s53
      %p57 = scmp.eq.s32.totalorder %s17, 0
      %p58 = por %p56, %p57
      %p59 = scmp.ne.s32.totalorder %s51, %s53
      %p60 = scmp.eq.s32.totalorder %s22, 1
      %p61 = por %p59, %p60
      %p62 = scmp.ne.s32.totalorder %s53, %s54
      %p63 = scmp.eq.s32.totalorder %s22, 0
      %p64 = por %p62, %p63
      %p65 = scmp.ne.s32.totalorder %s53, %s54
      %p66 = scmp.eq.s32.totalorder %s23, 1
      %p67 = por %p65, %p66
      %p69 = scmp.ne.s32.totalorder %s54, %s68
      %p70 = scmp.eq.s32.totalorder %s23, 0
      %p71 = por %p69, %p70
      %s73 = sadd.s32 %s72, 1
      %p76 = scmp.eq.s32.totalorder %s17, 1
      %p77 = scmp.ne.s32.totalorder %s72, %s74
      %p78 = scmp.eq.s32.totalorder %s17, 0
      %p79 = por %p77, %p78
      %p80 = scmp.ne.s32.totalorder %s72, %s74
      %p81 = scmp.eq.s32.totalorder %s22, 1
      %p82 = por %p80, %p81
      %p83 = scmp.ne.s32.totalorder %s74, %s75
      %p84 = scmp.eq.s32.totalorder %s22, 0
      %p85 = por %p83, %p84
      %p86 = scmp.ne.s32.totalorder %s74, %s75
      %p87 = scmp.eq.s32.totalorder %s23, 1
      %p88 = por %p86, %p87
      %p90 = scmp.ne.s32.totalorder %s75, %s89
      %p91 = scmp.eq.s32.totalorder %s23, 0
      %p92 = por %p90, %p91
      %s94 = sadd.s32 %s93, 1
      %p97 = scmp.eq.s32.totalorder %s17, 1
      %p98 = scmp.ne.s32.totalorder %s93, %s95
      %p99 = scmp.eq.s32.totalorder %s17, 0
      %p100 = por %p98, %p99
      %p101 = scmp.ne.s32.totalorder %s93, %s95
      %p102 = scmp.eq.s32.totalorder %s22, 1
      %p103 = por %p101, %p102
      %p104 = scmp.ne.s32.totalorder %s95, %s96
      %p105 = scmp.eq.s32.totalorder %s22, 0
      %p106 = por %p104, %p105
      %p107 = scmp.ne.s32.totalorder %s95, %s96
      %p108 = scmp.eq.s32.totalorder %s23, 1
      %p109 = por %p107, %p108
      %p111 = scmp.ne.s32.totalorder %s96, %s110
      %p112 = scmp.eq.s32.totalorder %s23, 0
      %p113 = por %p111, %p112
      %s115 = sadd.s32 %s114, 1
      %p118 = scmp.eq.s32.totalorder %s17, 1
      %p119 = scmp.ne.s32.totalorder %s114, %s116
      %p120 = scmp.eq.s32.totalorder %s17, 0
      %p121 = por %p119, %p120
      %p122 = scmp.ne.s32.totalorder %s114, %s116
      %p123 = scmp.eq.s32.totalorder %s22, 1
      %p124 = por %p122, %p123
      %p125 = scmp.ne.s32.totalorder %s116, %s117
      %p126 = scmp.eq.s32.totalorder %s22, 0
      %p127 = por %p125, %p126
      %p128 = scmp.ne.s32.totalorder %s116, %s117
      %p129 = scmp.eq.s32.totalorder %s23, 1
      %p130 = por %p128, %p129
      %p132 = scmp.ne.s32.totalorder %s117, %s131
      %p133 = scmp.eq.s32.totalorder %s23, 0
      %p134 = por %p132, %p133
      %s136 = sadd.s32 %s135, 1
      %p139 = scmp.eq.s32.totalorder %s17, 1
      %p140 = scmp.ne.s32.totalorder %s135, %s137
      %p141 = scmp.eq.s32.totalorder %s17, 0
      %p142 = por %p140, %p141
      %p143 = scmp.ne.s32.totalorder %s135, %s137
      %p144 = scmp.eq.s32.totalorder %s22, 1
      %p145 = por %p143, %p144
      %p146 = scmp.ne.s32.totalorder %s137, %s138
      %p147 = scmp.eq.s32.totalorder %s22, 0
      %p148 = por %p146, %p147
      %p149 = scmp.ne.s32.totalorder %s137, %s138
      %p150 = scmp.eq.s32.totalorder %s23, 1
      %p151 = por %p149, %p150
      %p153 = scmp.ne.s32.totalorder %s138, %s152
      %p154 = scmp.eq.s32.totalorder %s23, 0
      %p155 = por %p153, %p154
      %s157 = sadd.s32 %s156, 1
      %p160 = scmp.eq.s32.totalorder %s17, 1
      %p161 = scmp.ne.s32.totalorder %s156, %s158
      %p162 = scmp.eq.s32.totalorder %s17, 0
      %p163 = por %p161, %p162
      %p164 = scmp.ne.s32.totalorder %s156, %s158
      %p165 = scmp.eq.s32.totalorder %s22, 1
      %p166 = por %p164, %p165
      %p167 = scmp.ne.s32.totalorder %s158, %s159
      %p168 = scmp.eq.s32.totalorder %s22, 0
      %p169 = por %p167, %p168
      %p170 = scmp.ne.s32.totalorder %s158, %s159
      %p171 = scmp.eq.s32.totalorder %s23, 1
      %p172 = por %p170, %p171
      %p174 = scmp.ne.s32.totalorder %s159, %s173
      %p175 = scmp.eq.s32.totalorder %s23, 0
      %p176 = por %p174, %p175
      %s178 = sadd.s32 %s177, 1
      %p181 = scmp.eq.s32.totalorder %s17, 1
      %p182 = scmp.ne.s32.totalorder %s177, %s179
      %p183 = scmp.eq.s32.totalorder %s17, 0
      %p184 = por %p182, %p183
      %p185 = scmp.ne.s32.totalorder %s177, %s179
      %p186 = scmp.eq.s32.totalorder %s22, 1
      %p187 = por %p185, %p186
      %p188 = scmp.ne.s32.totalorder %s179, %s180
      %p189 = scmp.eq.s32.totalorder %s22, 0
      %p190 = por %p188, %p189
      %p191 = scmp.ne.s32.totalorder %s179, %s180
      %p192 = scmp.eq.s32.totalorder %s23, 1
      %p193 = por %p191, %p192
      %p195 = scmp.ne.s32.totalorder %s180, %s194
      %p196 = scmp.eq.s32.totalorder %s23, 0
      %p197 = por %p195, %p196
      %s199 = sadd.s32 %s198, 1
      %p202 = scmp.eq.s32.totalorder %s17, 1
      %p203 = scmp.ne.s32.totalorder %s198, %s200
      %p204 = scmp.eq.s32.totalorder %s17, 0
      %p205 = por %p203, %p204
      %p206 = scmp.ne.s32.totalorder %s198, %s200
      %p207 = scmp.eq.s32.totalorder %s22, 1
      %p208 = por %p206, %p207
      %p209 = scmp.ne.s32.totalorder %s200, %s201
      %p210 = scmp.eq.s32.totalorder %s22, 0
      %p211 = por %p209, %p210
      %p212 = scmp.ne.s32.totalorder %s200, %s201
      %p213 = scmp.eq.s32.totalorder %s23, 1
      %p214 = por %p212, %p213
      %p216 = scmp.ne.s32.totalorder %s201, %s215
      %p217 = scmp.eq.s32.totalorder %s23, 0
      %p218 = por %p216, %p217
      %s219 = ssub.s32 %s17, %s24
      %p220 = scmp.eq.s32.totalorder %s219, 0
      %s222 = sadd.s32 %s221, 1
      %s223 = scalar_select %p220, %s221, %s222
      %p226 = pneg %p220
      %p227 = scmp.eq.s32.totalorder %s17, 1
      %p228 = por %p226, %p227
      %p229 = scmp.ne.s32.totalorder %s221, %s224
      %p230 = scmp.eq.s32.totalorder %s17, 0
      %p231 = por %p229, %p230
      %p232 = scmp.ne.s32.totalorder %s221, %s224
      %p233 = scmp.eq.s32.totalorder %s22, 1
      %p234 = por %p232, %p233
      %p235 = scmp.ne.s32.totalorder %s224, %s225
      %p236 = scmp.eq.s32.totalorder %s22, 0
      %p237 = por %p235, %p236
      %p238 = scmp.ne.s32.totalorder %s224, %s225
      %p239 = scmp.eq.s32.totalorder %s23, 1
      %p240 = por %p238, %p239
      %p242 = scmp.ne.s32.totalorder %s225, %s241
      %p243 = scmp.eq.s32.totalorder %s23, 0
      %p244 = por %p242, %p243
      %p245 = scmp.le.s32.totalorder 1, %s17
      %p246 = scmp.lt.s32.totalorder %s17, 3
      %p247 = pnand %p245, %p246
      %p248 = pneg %p247
      // Predicated region
      $region9: #{splitnn_forward.1} parent=5 // pred_check
        _
      $region10: #{splitnn_forward.1} parent=5 // pred_check_branch
        %250 = sbr.rel (%p247) target = $region12
      $region11: #{splitnn_forward.1} parent=5 // pred_region
        %s251 = ssub.s32 %s17, 1
        // Predicated region
        $region13: #{splitnn_forward.1} parent=11 // pred_check
          %p252 = pneg %p64
        $region14: #{splitnn_forward.1} parent=11 // pred_check_branch
          %254 = sbr.rel (%p252) target = $region16
        $region15: #{splitnn_forward.1} parent=11 // pred_region
          %s256 = ssub.s32 25088, 25088
          %257 = vsyncadd [#allocation3], %s256
          %s258 = sshll.u32 [#allocation2], 4
          %s259 = int_to_ptr.vmem [resolvable:$true] %s258
          %264 = dma.hbm_to_vmem [thread:$0]  %s1, 25088, %s259, [#allocation3], 256, 256, 16
        $region16: #{splitnn_forward.1} parent=11 // pred_fallthru
          _
        // Predicated region
        $region17: #{splitnn_forward.1} parent=11 // pred_check
          %p265 = pneg %p85
        $region18: #{splitnn_forward.1} parent=11 // pred_check_branch
          %267 = sbr.rel (%p265) target = $region20
        $region19: #{splitnn_forward.1} parent=11 // pred_region
          _
        $region20: #{splitnn_forward.1} parent=11 // pred_fallthru
          _
        // Predicated region
        $region21: #{splitnn_forward.1} parent=11 // pred_check
          %p268 = pneg %p106
        $region22: #{splitnn_forward.1} parent=11 // pred_check_branch
          %270 = sbr.rel (%p268) target = $region24
        $region23: #{splitnn_forward.1} parent=11 // pred_region
          %s272 = ssub.s32 4096, 4096
          %273 = vsyncadd [#allocation5], %s272
          %s274 = sshll.u32 [#allocation4], 4
          %s275 = int_to_ptr.vmem [resolvable:$true] %s274
          %280 = dma.hbm_to_vmem [thread:$0]  %s3, 4096, %s275, [#allocation5], 64, 64, 4
        $region24: #{splitnn_forward.1} parent=11 // pred_fallthru
          _
        // Predicated region
        $region25: #{splitnn_forward.1} parent=11 // pred_check
          %p281 = pneg %p127
        $region26: #{splitnn_forward.1} parent=11 // pred_check_branch
          %283 = sbr.rel (%p281) target = $region28
        $region27: #{splitnn_forward.1} parent=11 // pred_region
          _
        $region28: #{splitnn_forward.1} parent=11 // pred_fallthru
          _
        // Predicated region
        $region29: #{splitnn_forward.1} parent=11 // pred_check
          %p284 = pneg %p148
        $region30: #{splitnn_forward.1} parent=11 // pred_check_branch
          %286 = sbr.rel (%p284) target = $region32
        $region31: #{splitnn_forward.1} parent=11 // pred_region
          _
        $region32: #{splitnn_forward.1} parent=11 // pred_fallthru
          _
        // Predicated region
        $region33: #{splitnn_forward.1} parent=11 // pred_check
          %p287 = pneg %p169
        $region34: #{splitnn_forward.1} parent=11 // pred_check_branch
          %289 = sbr.rel (%p287) target = $region36
        $region35: #{splitnn_forward.1} parent=11 // pred_region
          _
        $region36: #{splitnn_forward.1} parent=11 // pred_fallthru
          _
        // Predicated region
        $region37: #{splitnn_forward.1} parent=11 // pred_check
          %p290 = pneg %p190
        $region38: #{splitnn_forward.1} parent=11 // pred_check_branch
          %292 = sbr.rel (%p290) target = $region40
        $region39: #{splitnn_forward.1} parent=11 // pred_region
          _
        $region40: #{splitnn_forward.1} parent=11 // pred_fallthru
          _
        // Predicated region
        $region41: #{splitnn_forward.1} parent=11 // pred_check
          %p293 = pneg %p211
        $region42: #{splitnn_forward.1} parent=11 // pred_check_branch
          %295 = sbr.rel (%p293) target = $region44
        $region43: #{splitnn_forward.1} parent=11 // pred_region
          _
        $region44: #{splitnn_forward.1} parent=11 // pred_fallthru
          _
      $region12: #{splitnn_forward.1} parent=5 // pred_fallthru
        _
      %p296 = scmp.lt.s32.totalorder %s17, 2
      // Predicated region
      $region45: #{splitnn_forward.1} parent=5 // pred_check
        %p297 = pneg %p296
      $region46: #{splitnn_forward.1} parent=5 // pred_check_branch
        %299 = sbr.rel (%p297) target = $region48
      $region47: #{splitnn_forward.1} parent=5 // pred_region
        // Predicated region
        $region49: #{splitnn_forward.1} parent=47 // pred_check
          %p300 = pneg %p37
        $region50: #{splitnn_forward.1} parent=47 // pred_check_branch
          %302 = sbr.rel (%p300) target = $region52
        $region51: #{splitnn_forward.1} parent=47 // pred_region
          %s303 = smul.u32 2, %s17
          %p304 = scmp.lt.s32.totalorder %s303, 3
          %s305 = scalar_select %p304, %s303, 3
          %s306 = smul.addr %s305, 7
          %s307 = smul.addr %s306, 4
          %s308 = scalar_lea.vmem %s0, %s307
          %s309 = smul.u32 2, %s17
        $region52: #{splitnn_forward.1} parent=47 // pred_fallthru
          _
      $region48: #{splitnn_forward.1} parent=5 // pred_fallthru
        _
      %p310 = scmp.le.s32.totalorder 1, %s17
      %p311 = scmp.lt.s32.totalorder %s17, 3
      %p312 = pnand %p310, %p311
      %p313 = pneg %p312
      // Predicated region
      $region53: #{splitnn_forward.1} parent=5 // pred_check
        _
      $region54: #{splitnn_forward.1} parent=5 // pred_check_branch
        %315 = sbr.rel (%p312) target = $region56
      $region55: #{splitnn_forward.1} parent=5 // pred_region
        %s316 = ssub.s32 %s17, 1
        // Predicated region
        $region57: #{splitnn_forward.1} parent=55 // pred_check
          %p317 = pneg %p64
        $region58: #{splitnn_forward.1} parent=55 // pred_check_branch
          %319 = sbr.rel (%p317) target = $region60
        $region59: #{splitnn_forward.1} parent=55 // pred_region
          %320 = dma.done [#allocation3], 25088
        $region60: #{splitnn_forward.1} parent=55 // pred_fallthru
          _
        // Predicated region
        $region61: #{splitnn_forward.1} parent=55 // pred_check
          %p321 = pneg %p106
        $region62: #{splitnn_forward.1} parent=55 // pred_check_branch
          %323 = sbr.rel (%p321) target = $region64
        $region63: #{splitnn_forward.1} parent=55 // pred_region
          %324 = dma.done [#allocation5], 4096
        $region64: #{splitnn_forward.1} parent=55 // pred_fallthru
          _
        %s325 = smul.u32 2, %s22
        %p326 = scmp.lt.s32.totalorder %s325, 3
        %s327 = scalar_select %p326, %s325, 3
        %s328 = smul.addr %s327, 7
        %s329 = smul.addr %s328, 4
        %s330 = scalar_lea.vmem %s0, %s329
        %p331 = pneg %p43
        %p332 = pneg %p40
        %p333 = pneg %p64
        %p334 = pneg %p61
        %p335 = pneg %p85
        %p336 = pneg %p82
        %p337 = pneg %p106
        %p338 = pneg %p103
        %p339 = pneg %p127
        %p340 = pneg %p124
        %p341 = pneg %p148
        %p342 = pneg %p145
        %p343 = pneg %p169
        %p344 = pneg %p166
        %p345 = pneg %p190
        %p346 = pneg %p187
        %p347 = pneg %p211
        %p348 = pneg %p208
        %p349 = pneg %p237
        %p350 = pneg %p234
        %s351 = smul.u32 2, %s22
        %p352 = scmp.lt.s32.totalorder %s351, 3
        %s353 = scalar_select %p352, %s351, 3
        %s354 = smul.addr %s353, 8
        %s355 = scalar_lea.vmem %s9, %s354
        %s356 = smul.u32 2, %s22
        %p357 = scmp.lt.s32.totalorder %s356, 3
        %s358 = scalar_select %p357, %s356, 3
        %s359 = smul.addr %s358, 7
        %s360 = smul.addr %s359, 4
        %s361 = scalar_lea.vmem %s0, %s360
        %s362 = smul.u32 2, %s22
        %s363 = smul.u32 2, %s22
        %p364 = scmp.lt.s32.totalorder %s363, 3
        %s365 = scalar_select %p364, %s363, 3
        %s366 = smul.addr %s365, 8
        %s367 = scalar_lea.vmem %s9, %s366
        %s368 = smul.u32 2, %s22
        %v370 = vld [vmem:[%s361] sm:$0xff]
        %v371 = vld [vmem:[%s361 + $0x8] sm:$0xff]
        %v372 = vld [vmem:[%s361 + $0x10] sm:$0xff]
        %v373 = vld [vmem:[%s361 + $0x18] sm:$0xf]
        %v374 = vld [vmem:[%s361 + $0x1c] sm:$0xff]
        %v375 = vld [vmem:[%s361 + $0x24] sm:$0xff]
        %v376 = vld [vmem:[%s361 + $0x2c] sm:$0xff]
        %v377 = vld [vmem:[%s361 + $0x34] sm:$0xf]
        %v378 = vld [vmem:[#allocation2] sm:$0xff]
        %v379 = vld [vmem:[#allocation2 + $0x8] sm:$0xff]
        %v380 = vld [vmem:[#allocation2 + $0x10] sm:$0xff]
        %v381 = vld [vmem:[#allocation2 + $0x18] sm:$0xff]
        %v382 = vld [vmem:[#allocation2 + $0x20] sm:$0xff]
        %v383 = vld [vmem:[#allocation2 + $0x28] sm:$0xff]
        %v384 = vld [vmem:[#allocation2 + $0x30] sm:$0xff]
        %v385 = vld [vmem:[#allocation2 + $0x38] sm:$0xff]
        %v386 = vld [vmem:[#allocation2 + $0x40] sm:$0xff]
        %v387 = vld [vmem:[#allocation2 + $0x48] sm:$0xff]
        %v388 = vld [vmem:[#allocation2 + $0x50] sm:$0xff]
        %v389 = vld [vmem:[#allocation2 + $0x58] sm:$0xff]
        %v390 = vld [vmem:[#allocation2 + $0x60] sm:$0xff]
        %v391 = vld [vmem:[#allocation2 + $0x68] sm:$0xff]
        %v392 = vld [vmem:[#allocation2 + $0x70] sm:$0xff]
        %v393 = vld [vmem:[#allocation2 + $0x78] sm:$0xff]
        %v394 = vld [vmem:[#allocation2 + $0x80] sm:$0xff]
        %v395 = vld [vmem:[#allocation2 + $0x88] sm:$0xff]
        %v396 = vld [vmem:[#allocation2 + $0x90] sm:$0xff]
        %v397 = vld [vmem:[#allocation2 + $0x98] sm:$0xff]
        %v398 = vld [vmem:[#allocation2 + $0xa0] sm:$0xff]
        %v399 = vld [vmem:[#allocation2 + $0xa8] sm:$0xff]
        %v400 = vld [vmem:[#allocation2 + $0xb0] sm:$0xff]
        %v401 = vld [vmem:[#allocation2 + $0xb8] sm:$0xff]
        %v402 = vld [vmem:[#allocation2 + $0xc0] sm:$0xff]
        %v403 = vld [vmem:[#allocation2 + $0xc8] sm:$0xff]
        %v404 = vld [vmem:[#allocation2 + $0xd0] sm:$0xff]
        %v405 = vld [vmem:[#allocation2 + $0xd8] sm:$0xff]
        %v406 = vld [vmem:[#allocation2 + $0xe0] sm:$0xff]
        %v407 = vld [vmem:[#allocation2 + $0xe8] sm:$0xff]
        %v408 = vld [vmem:[#allocation2 + $0xf0] sm:$0xff]
        %v409 = vld [vmem:[#allocation2 + $0xf8] sm:$0xff]
        %v410 = vld [vmem:[#allocation2 + $0x100] sm:$0xff]
        %v411 = vld [vmem:[#allocation2 + $0x108] sm:$0xff]
        %v412 = vld [vmem:[#allocation2 + $0x110] sm:$0xff]
        %v413 = vld [vmem:[#allocation2 + $0x118] sm:$0xff]
        %v414 = vld [vmem:[#allocation2 + $0x120] sm:$0xff]
        %v415 = vld [vmem:[#allocation2 + $0x128] sm:$0xff]
        %v416 = vld [vmem:[#allocation2 + $0x130] sm:$0xff]
        %v417 = vld [vmem:[#allocation2 + $0x138] sm:$0xff]
        %v418 = vld [vmem:[#allocation2 + $0x140] sm:$0xff]
        %v419 = vld [vmem:[#allocation2 + $0x148] sm:$0xff]
        %v420 = vld [vmem:[#allocation2 + $0x150] sm:$0xff]
        %v421 = vld [vmem:[#allocation2 + $0x158] sm:$0xff]
        %v422 = vld [vmem:[#allocation2 + $0x160] sm:$0xff]
        %v423 = vld [vmem:[#allocation2 + $0x168] sm:$0xff]
        %v424 = vld [vmem:[#allocation2 + $0x170] sm:$0xff]
        %v425 = vld [vmem:[#allocation2 + $0x178] sm:$0xff]
        %v426 = vld [vmem:[#allocation2 + $0x180] sm:$0xff]
        %v427 = vld [vmem:[#allocation2 + $0x188] sm:$0xff]
        %v428 = vld [vmem:[#allocation2 + $0x190] sm:$0xff]
        %v429 = vld [vmem:[#allocation2 + $0x198] sm:$0xff]
        %v430 = vld [vmem:[#allocation2 + $0x1a0] sm:$0xff]
        %v431 = vld [vmem:[#allocation2 + $0x1a8] sm:$0xff]
        %v432 = vld [vmem:[#allocation2 + $0x1b0] sm:$0xff]
        %v433 = vld [vmem:[#allocation2 + $0x1b8] sm:$0xff]
        %v434 = vld [vmem:[#allocation2 + $0x1c0] sm:$0xff]
        %v435 = vld [vmem:[#allocation2 + $0x1c8] sm:$0xff]
        %v436 = vld [vmem:[#allocation2 + $0x1d0] sm:$0xff]
        %v437 = vld [vmem:[#allocation2 + $0x1d8] sm:$0xff]
        %v438 = vld [vmem:[#allocation2 + $0x1e0] sm:$0xff]
        %v439 = vld [vmem:[#allocation2 + $0x1e8] sm:$0xff]
        %v440 = vld [vmem:[#allocation2 + $0x1f0] sm:$0xff]
        %v441 = vld [vmem:[#allocation2 + $0x1f8] sm:$0xff]
        %v442 = vld [vmem:[#allocation2 + $0x200] sm:$0xff]
        %v443 = vld [vmem:[#allocation2 + $0x208] sm:$0xff]
        %v444 = vld [vmem:[#allocation2 + $0x210] sm:$0xff]
        %v445 = vld [vmem:[#allocation2 + $0x218] sm:$0xff]
        %v446 = vld [vmem:[#allocation2 + $0x220] sm:$0xff]
        %v447 = vld [vmem:[#allocation2 + $0x228] sm:$0xff]
        %v448 = vld [vmem:[#allocation2 + $0x230] sm:$0xff]
        %v449 = vld [vmem:[#allocation2 + $0x238] sm:$0xff]
        %v450 = vld [vmem:[#allocation2 + $0x240] sm:$0xff]
        %v451 = vld [vmem:[#allocation2 + $0x248] sm:$0xff]
        %v452 = vld [vmem:[#allocation2 + $0x250] sm:$0xff]
        %v453 = vld [vmem:[#allocation2 + $0x258] sm:$0xff]
        %v454 = vld [vmem:[#allocation2 + $0x260] sm:$0xff]
        %v455 = vld [vmem:[#allocation2 + $0x268] sm:$0xff]
        %v456 = vld [vmem:[#allocation2 + $0x270] sm:$0xff]
        %v457 = vld [vmem:[#allocation2 + $0x278] sm:$0xff]
        %v458 = vld [vmem:[#allocation2 + $0x280] sm:$0xff]
        %v459 = vld [vmem:[#allocation2 + $0x288] sm:$0xff]
        %v460 = vld [vmem:[#allocation2 + $0x290] sm:$0xff]
        %v461 = vld [vmem:[#allocation2 + $0x298] sm:$0xff]
        %v462 = vld [vmem:[#allocation2 + $0x2a0] sm:$0xff]
        %v463 = vld [vmem:[#allocation2 + $0x2a8] sm:$0xff]
        %v464 = vld [vmem:[#allocation2 + $0x2b0] sm:$0xff]
        %v465 = vld [vmem:[#allocation2 + $0x2b8] sm:$0xff]
        %v466 = vld [vmem:[#allocation2 + $0x2c0] sm:$0xff]
        %v467 = vld [vmem:[#allocation2 + $0x2c8] sm:$0xff]
        %v468 = vld [vmem:[#allocation2 + $0x2d0] sm:$0xff]
        %v469 = vld [vmem:[#allocation2 + $0x2d8] sm:$0xff]
        %v470 = vld [vmem:[#allocation2 + $0x2e0] sm:$0xff]
        %v471 = vld [vmem:[#allocation2 + $0x2e8] sm:$0xff]
        %v472 = vld [vmem:[#allocation2 + $0x2f0] sm:$0xff]
        %v473 = vld [vmem:[#allocation2 + $0x2f8] sm:$0xff]
        %v474 = vld [vmem:[#allocation2 + $0x300] sm:$0xff]
        %v475 = vld [vmem:[#allocation2 + $0x308] sm:$0xff]
        %v476 = vld [vmem:[#allocation2 + $0x310] sm:$0xff]
        %v477 = vld [vmem:[#allocation2 + $0x318] sm:$0xff]
        %v478 = vld [vmem:[#allocation2 + $0x320] sm:$0xff]
        %v479 = vld [vmem:[#allocation2 + $0x328] sm:$0xff]
        %v480 = vld [vmem:[#allocation2 + $0x330] sm:$0xff]
        %v481 = vld [vmem:[#allocation2 + $0x338] sm:$0xff]
        %v482 = vld [vmem:[#allocation2 + $0x340] sm:$0xff]
        %v483 = vld [vmem:[#allocation2 + $0x348] sm:$0xff]
        %v484 = vld [vmem:[#allocation2 + $0x350] sm:$0xff]
        %v485 = vld [vmem:[#allocation2 + $0x358] sm:$0xff]
        %v486 = vld [vmem:[#allocation2 + $0x360] sm:$0xff]
        %v487 = vld [vmem:[#allocation2 + $0x368] sm:$0xff]
        %v488 = vld [vmem:[#allocation2 + $0x370] sm:$0xff]
        %v489 = vld [vmem:[#allocation2 + $0x378] sm:$0xff]
        %v490 = vld [vmem:[#allocation2 + $0x380] sm:$0xff]
        %v491 = vld [vmem:[#allocation2 + $0x388] sm:$0xff]
        %v492 = vld [vmem:[#allocation2 + $0x390] sm:$0xff]
        %v493 = vld [vmem:[#allocation2 + $0x398] sm:$0xff]
        %v494 = vld [vmem:[#allocation2 + $0x3a0] sm:$0xff]
        %v495 = vld [vmem:[#allocation2 + $0x3a8] sm:$0xff]
        %v496 = vld [vmem:[#allocation2 + $0x3b0] sm:$0xff]
        %v497 = vld [vmem:[#allocation2 + $0x3b8] sm:$0xff]
        %v498 = vld [vmem:[#allocation2 + $0x3c0] sm:$0xff]
        %v499 = vld [vmem:[#allocation2 + $0x3c8] sm:$0xff]
        %v500 = vld [vmem:[#allocation2 + $0x3d0] sm:$0xff]
        %v501 = vld [vmem:[#allocation2 + $0x3d8] sm:$0xff]
        %v502 = vld [vmem:[#allocation2 + $0x3e0] sm:$0xff]
        %v503 = vld [vmem:[#allocation2 + $0x3e8] sm:$0xff]
        %v504 = vld [vmem:[#allocation2 + $0x3f0] sm:$0xff]
        %v505 = vld [vmem:[#allocation2 + $0x3f8] sm:$0xff]
        %v506 = vld [vmem:[#allocation2 + $0x400] sm:$0xff]
        %v507 = vld [vmem:[#allocation2 + $0x408] sm:$0xff]
        %v508 = vld [vmem:[#allocation2 + $0x410] sm:$0xff]
        %v509 = vld [vmem:[#allocation2 + $0x418] sm:$0xff]
        %v510 = vld [vmem:[#allocation2 + $0x420] sm:$0xff]
        %v511 = vld [vmem:[#allocation2 + $0x428] sm:$0xff]
        %v512 = vld [vmem:[#allocation2 + $0x430] sm:$0xff]
        %v513 = vld [vmem:[#allocation2 + $0x438] sm:$0xff]
        %v514 = vld [vmem:[#allocation2 + $0x440] sm:$0xff]
        %v515 = vld [vmem:[#allocation2 + $0x448] sm:$0xff]
        %v516 = vld [vmem:[#allocation2 + $0x450] sm:$0xff]
        %v517 = vld [vmem:[#allocation2 + $0x458] sm:$0xff]
        %v518 = vld [vmem:[#allocation2 + $0x460] sm:$0xff]
        %v519 = vld [vmem:[#allocation2 + $0x468] sm:$0xff]
        %v520 = vld [vmem:[#allocation2 + $0x470] sm:$0xff]
        %v521 = vld [vmem:[#allocation2 + $0x478] sm:$0xff]
        %v522 = vld [vmem:[#allocation2 + $0x480] sm:$0xff]
        %v523 = vld [vmem:[#allocation2 + $0x488] sm:$0xff]
        %v524 = vld [vmem:[#allocation2 + $0x490] sm:$0xff]
        %v525 = vld [vmem:[#allocation2 + $0x498] sm:$0xff]
        %v526 = vld [vmem:[#allocation2 + $0x4a0] sm:$0xff]
        %v527 = vld [vmem:[#allocation2 + $0x4a8] sm:$0xff]
        %v528 = vld [vmem:[#allocation2 + $0x4b0] sm:$0xff]
        %v529 = vld [vmem:[#allocation2 + $0x4b8] sm:$0xff]
        %v530 = vld [vmem:[#allocation2 + $0x4c0] sm:$0xff]
        %v531 = vld [vmem:[#allocation2 + $0x4c8] sm:$0xff]
        %v532 = vld [vmem:[#allocation2 + $0x4d0] sm:$0xff]
        %v533 = vld [vmem:[#allocation2 + $0x4d8] sm:$0xff]
        %v534 = vld [vmem:[#allocation2 + $0x4e0] sm:$0xff]
        %v535 = vld [vmem:[#allocation2 + $0x4e8] sm:$0xff]
        %v536 = vld [vmem:[#allocation2 + $0x4f0] sm:$0xff]
        %v537 = vld [vmem:[#allocation2 + $0x4f8] sm:$0xff]
        %v538 = vld [vmem:[#allocation2 + $0x500] sm:$0xff]
        %v539 = vld [vmem:[#allocation2 + $0x508] sm:$0xff]
        %v540 = vld [vmem:[#allocation2 + $0x510] sm:$0xff]
        %v541 = vld [vmem:[#allocation2 + $0x518] sm:$0xff]
        %v542 = vld [vmem:[#allocation2 + $0x520] sm:$0xff]
        %v543 = vld [vmem:[#allocation2 + $0x528] sm:$0xff]
        %v544 = vld [vmem:[#allocation2 + $0x530] sm:$0xff]
        %v545 = vld [vmem:[#allocation2 + $0x538] sm:$0xff]
        %v546 = vld [vmem:[#allocation2 + $0x540] sm:$0xff]
        %v547 = vld [vmem:[#allocation2 + $0x548] sm:$0xff]
        %v548 = vld [vmem:[#allocation2 + $0x550] sm:$0xff]
        %v549 = vld [vmem:[#allocation2 + $0x558] sm:$0xff]
        %v550 = vld [vmem:[#allocation2 + $0x560] sm:$0xff]
        %v551 = vld [vmem:[#allocation2 + $0x568] sm:$0xff]
        %v552 = vld [vmem:[#allocation2 + $0x570] sm:$0xff]
        %v553 = vld [vmem:[#allocation2 + $0x578] sm:$0xff]
        %v554 = vld [vmem:[#allocation2 + $0x580] sm:$0xff]
        %v555 = vld [vmem:[#allocation2 + $0x588] sm:$0xff]
        %v556 = vld [vmem:[#allocation2 + $0x590] sm:$0xff]
        %v557 = vld [vmem:[#allocation2 + $0x598] sm:$0xff]
        %v558 = vld [vmem:[#allocation2 + $0x5a0] sm:$0xff]
        %v559 = vld [vmem:[#allocation2 + $0x5a8] sm:$0xff]
        %v560 = vld [vmem:[#allocation2 + $0x5b0] sm:$0xff]
        %v561 = vld [vmem:[#allocation2 + $0x5b8] sm:$0xff]
        %v562 = vld [vmem:[#allocation2 + $0x5c0] sm:$0xff]
        %v563 = vld [vmem:[#allocation2 + $0x5c8] sm:$0xff]
        %v564 = vld [vmem:[#allocation2 + $0x5d0] sm:$0xff]
        %v565 = vld [vmem:[#allocation2 + $0x5d8] sm:$0xff]
        %v566 = vld [vmem:[#allocation2 + $0x5e0] sm:$0xff]
        %v567 = vld [vmem:[#allocation2 + $0x5e8] sm:$0xff]
        %v568 = vld [vmem:[#allocation2 + $0x5f0] sm:$0xff]
        %v569 = vld [vmem:[#allocation2 + $0x5f8] sm:$0xff]
        %v570 = vld [vmem:[#allocation2 + $0x600] sm:$0xff]
        %v571 = vld [vmem:[#allocation2 + $0x608] sm:$0xff]
        %v572 = vld [vmem:[#allocation2 + $0x610] sm:$0xff]
        %v573 = vld [vmem:[#allocation2 + $0x618] sm:$0xff]
        %v574 = vld [vmem:[%s2] sm:$0xf]
        %v576 = vlaneseq
        %v577 = vshrl.u32 %v576, 7
        %v578 = vsub.s32 0, %v577
        %v579 = vrot.slane %v574, %v578
        %v580 = vlaneseq
        %v581 = vshrl.u32 %v580, 7
        %v582 = vsub.s32 1, %v581
        %v583 = vrot.slane %v574, %v582
        %v584 = vlaneseq
        %v585 = vshrl.u32 %v584, 7
        %v586 = vsub.s32 2, %v585
        %v587 = vrot.slane %v574, %v586
        %v588 = vlaneseq
        %v589 = vshrl.u32 %v588, 7
        %v590 = vsub.s32 3, %v589
        %v591 = vrot.slane %v574, %v590
        %v604 = vunpack.c.l.b16 %v370
        %v605 = vunpack.c.h.b16 %v370
        %v606 = vunpack.c.l.b16 %v371
        %v607 = vunpack.c.h.b16 %v371
        %v608 = vunpack.c.l.b16 %v372
        %v609 = vunpack.c.h.b16 %v372
        %v610 = vunpack.c.l.b16 %v373
        %v611 = vunpack.c.l.b16 %v374
        %v612 = vunpack.c.h.b16 %v374
        %v613 = vunpack.c.l.b16 %v375
        %v614 = vunpack.c.h.b16 %v375
        %v615 = vunpack.c.l.b16 %v376
        %v616 = vunpack.c.h.b16 %v376
        %v617 = vunpack.c.l.b16 %v377
        %v618 = vpack.c.b16 %v611, %v604
        %v619 = vpack.c.b16 %v612, %v605
        %v620 = vpack.c.b16 %v613, %v606
        %v621 = vpack.c.b16 %v614, %v607
        %v622 = vpack.c.b16 %v615, %v608
        %v623 = vpack.c.b16 %v616, %v609
        %v624 = vpack.c.b16 %v617, %v610
        %v827 = vunpack.c.l.b16 %v378
        %v828 = vunpack.c.h.b16 %v378
        %v829 = vunpack.c.l.b16 %v379
        %v830 = vunpack.c.h.b16 %v379
        %v831 = vunpack.c.l.b16 %v380
        %v832 = vunpack.c.h.b16 %v380
        %v833 = vunpack.c.l.b16 %v381
        %v834 = vunpack.c.h.b16 %v381
        %v835 = vunpack.c.l.b16 %v382
        %v836 = vunpack.c.h.b16 %v382
        %v837 = vunpack.c.l.b16 %v383
        %v838 = vunpack.c.h.b16 %v383
        %v839 = vunpack.c.l.b16 %v384
        %v840 = vunpack.c.h.b16 %v384
        %v841 = vunpack.c.l.b16 %v385
        %v842 = vunpack.c.h.b16 %v385
        %v843 = vunpack.c.l.b16 %v386
        %v844 = vunpack.c.h.b16 %v386
        %v845 = vunpack.c.l.b16 %v387
        %v846 = vunpack.c.h.b16 %v387
        %v847 = vunpack.c.l.b16 %v388
        %v848 = vunpack.c.h.b16 %v388
        %v849 = vunpack.c.l.b16 %v389
        %v850 = vunpack.c.h.b16 %v389
        %v851 = vunpack.c.l.b16 %v390
        %v852 = vunpack.c.h.b16 %v390
        %v853 = vunpack.c.l.b16 %v391
        %v854 = vunpack.c.h.b16 %v391
        %v855 = vunpack.c.l.b16 %v392
        %v856 = vunpack.c.h.b16 %v392
        %v857 = vunpack.c.l.b16 %v393
        %v858 = vunpack.c.h.b16 %v393
        %v859 = vunpack.c.l.b16 %v394
        %v860 = vunpack.c.h.b16 %v394
        %v861 = vunpack.c.l.b16 %v395
        %v862 = vunpack.c.h.b16 %v395
        %v863 = vunpack.c.l.b16 %v396
        %v864 = vunpack.c.h.b16 %v396
        %v865 = vunpack.c.l.b16 %v397
        %v866 = vunpack.c.h.b16 %v397
        %v867 = vunpack.c.l.b16 %v398
        %v868 = vunpack.c.h.b16 %v398
        %v869 = vunpack.c.l.b16 %v399
        %v870 = vunpack.c.h.b16 %v399
        %v871 = vunpack.c.l.b16 %v400
        %v872 = vunpack.c.h.b16 %v400
        %v873 = vunpack.c.l.b16 %v401
        %v874 = vunpack.c.h.b16 %v401
        %v875 = vunpack.c.l.b16 %v402
        %v876 = vunpack.c.h.b16 %v402
        %v877 = vunpack.c.l.b16 %v403
        %v878 = vunpack.c.h.b16 %v403
        %v879 = vunpack.c.l.b16 %v404
        %v880 = vunpack.c.h.b16 %v404
        %v881 = vunpack.c.l.b16 %v405
        %v882 = vunpack.c.h.b16 %v405
        %v883 = vunpack.c.l.b16 %v406
        %v884 = vunpack.c.h.b16 %v406
        %v885 = vunpack.c.l.b16 %v407
        %v886 = vunpack.c.h.b16 %v407
        %v887 = vunpack.c.l.b16 %v408
        %v888 = vunpack.c.h.b16 %v408
        %v889 = vunpack.c.l.b16 %v409
        %v890 = vunpack.c.h.b16 %v409
        %v891 = vunpack.c.l.b16 %v410
        %v892 = vunpack.c.h.b16 %v410
        %v893 = vunpack.c.l.b16 %v411
        %v894 = vunpack.c.h.b16 %v411
        %v895 = vunpack.c.l.b16 %v412
        %v896 = vunpack.c.h.b16 %v412
        %v897 = vunpack.c.l.b16 %v413
        %v898 = vunpack.c.h.b16 %v413
        %v899 = vunpack.c.l.b16 %v414
        %v900 = vunpack.c.h.b16 %v414
        %v901 = vunpack.c.l.b16 %v415
        %v902 = vunpack.c.h.b16 %v415
        %v903 = vunpack.c.l.b16 %v416
        %v904 = vunpack.c.h.b16 %v416
        %v905 = vunpack.c.l.b16 %v417
        %v906 = vunpack.c.h.b16 %v417
        %v907 = vunpack.c.l.b16 %v418
        %v908 = vunpack.c.h.b16 %v418
        %v909 = vunpack.c.l.b16 %v419
        %v910 = vunpack.c.h.b16 %v419
        %v911 = vunpack.c.l.b16 %v420
        %v912 = vunpack.c.h.b16 %v420
        %v913 = vunpack.c.l.b16 %v421
        %v914 = vunpack.c.h.b16 %v421
        %v915 = vunpack.c.l.b16 %v422
        %v916 = vunpack.c.h.b16 %v422
        %v917 = vunpack.c.l.b16 %v423
        %v918 = vunpack.c.h.b16 %v423
        %v919 = vunpack.c.l.b16 %v424
        %v920 = vunpack.c.h.b16 %v424
        %v921 = vunpack.c.l.b16 %v425
        %v922 = vunpack.c.h.b16 %v425
        %v923 = vunpack.c.l.b16 %v426
        %v924 = vunpack.c.h.b16 %v426
        %v925 = vunpack.c.l.b16 %v427
        %v926 = vunpack.c.h.b16 %v427
        %v927 = vunpack.c.l.b16 %v428
        %v928 = vunpack.c.h.b16 %v428
        %v929 = vunpack.c.l.b16 %v429
        %v930 = vunpack.c.h.b16 %v429
        %v931 = vunpack.c.l.b16 %v430
        %v932 = vunpack.c.h.b16 %v430
        %v933 = vunpack.c.l.b16 %v431
        %v934 = vunpack.c.h.b16 %v431
        %v935 = vunpack.c.l.b16 %v432
        %v936 = vunpack.c.h.b16 %v432
        %v937 = vunpack.c.l.b16 %v433
        %v938 = vunpack.c.h.b16 %v433
        %v939 = vunpack.c.l.b16 %v434
        %v940 = vunpack.c.h.b16 %v434
        %v941 = vunpack.c.l.b16 %v435
        %v942 = vunpack.c.h.b16 %v435
        %v943 = vunpack.c.l.b16 %v436
        %v944 = vunpack.c.h.b16 %v436
        %v945 = vunpack.c.l.b16 %v437
        %v946 = vunpack.c.h.b16 %v437
        %v947 = vunpack.c.l.b16 %v438
        %v948 = vunpack.c.h.b16 %v438
        %v949 = vunpack.c.l.b16 %v439
        %v950 = vunpack.c.h.b16 %v439
        %v951 = vunpack.c.l.b16 %v440
        %v952 = vunpack.c.h.b16 %v440
        %v953 = vunpack.c.l.b16 %v441
        %v954 = vunpack.c.h.b16 %v441
        %v955 = vunpack.c.l.b16 %v442
        %v956 = vunpack.c.h.b16 %v442
        %v957 = vunpack.c.l.b16 %v443
        %v958 = vunpack.c.h.b16 %v443
        %v959 = vunpack.c.l.b16 %v444
        %v960 = vunpack.c.h.b16 %v444
        %v961 = vunpack.c.l.b16 %v445
        %v962 = vunpack.c.h.b16 %v445
        %v963 = vunpack.c.l.b16 %v446
        %v964 = vunpack.c.h.b16 %v446
        %v965 = vunpack.c.l.b16 %v447
        %v966 = vunpack.c.h.b16 %v447
        %v967 = vunpack.c.l.b16 %v448
        %v968 = vunpack.c.h.b16 %v448
        %v969 = vunpack.c.l.b16 %v449
        %v970 = vunpack.c.h.b16 %v449
        %v971 = vunpack.c.l.b16 %v450
        %v972 = vunpack.c.h.b16 %v450
        %v973 = vunpack.c.l.b16 %v451
        %v974 = vunpack.c.h.b16 %v451
        %v975 = vunpack.c.l.b16 %v452
        %v976 = vunpack.c.h.b16 %v452
        %v977 = vunpack.c.l.b16 %v453
        %v978 = vunpack.c.h.b16 %v453
        %v979 = vunpack.c.l.b16 %v454
        %v980 = vunpack.c.h.b16 %v454
        %v981 = vunpack.c.l.b16 %v455
        %v982 = vunpack.c.h.b16 %v455
        %v983 = vunpack.c.l.b16 %v456
        %v984 = vunpack.c.h.b16 %v456
        %v985 = vunpack.c.l.b16 %v457
        %v986 = vunpack.c.h.b16 %v457
        %v987 = vunpack.c.l.b16 %v458
        %v988 = vunpack.c.h.b16 %v458
        %v989 = vunpack.c.l.b16 %v459
        %v990 = vunpack.c.h.b16 %v459
        %v991 = vunpack.c.l.b16 %v460
        %v992 = vunpack.c.h.b16 %v460
        %v993 = vunpack.c.l.b16 %v461
        %v994 = vunpack.c.h.b16 %v461
        %v995 = vunpack.c.l.b16 %v462
        %v996 = vunpack.c.h.b16 %v462
        %v997 = vunpack.c.l.b16 %v463
        %v998 = vunpack.c.h.b16 %v463
        %v999 = vunpack.c.l.b16 %v464
        %v1000 = vunpack.c.h.b16 %v464
        %v1001 = vunpack.c.l.b16 %v465
        %v1002 = vunpack.c.h.b16 %v465
        %v1003 = vunpack.c.l.b16 %v466
        %v1004 = vunpack.c.h.b16 %v466
        %v1005 = vunpack.c.l.b16 %v467
        %v1006 = vunpack.c.h.b16 %v467
        %v1007 = vunpack.c.l.b16 %v468
        %v1008 = vunpack.c.h.b16 %v468
        %v1009 = vunpack.c.l.b16 %v469
        %v1010 = vunpack.c.h.b16 %v469
        %v1011 = vunpack.c.l.b16 %v470
        %v1012 = vunpack.c.h.b16 %v470
        %v1013 = vunpack.c.l.b16 %v471
        %v1014 = vunpack.c.h.b16 %v471
        %v1015 = vunpack.c.l.b16 %v472
        %v1016 = vunpack.c.h.b16 %v472
        %v1017 = vunpack.c.l.b16 %v473
        %v1018 = vunpack.c.h.b16 %v473
        %v1019 = vunpack.c.l.b16 %v474
        %v1020 = vunpack.c.h.b16 %v474
        %v1021 = vunpack.c.l.b16 %v475
        %v1022 = vunpack.c.h.b16 %v475
        %v1023 = vunpack.c.l.b16 %v476
        %v1024 = vunpack.c.h.b16 %v476
        %v1025 = vunpack.c.l.b16 %v477
        %v1026 = vunpack.c.h.b16 %v477
        %v1027 = vunpack.c.l.b16 %v478
        %v1028 = vunpack.c.h.b16 %v478
        %v1029 = vunpack.c.l.b16 %v479
        %v1030 = vunpack.c.h.b16 %v479
        %v1031 = vunpack.c.l.b16 %v480
        %v1032 = vunpack.c.h.b16 %v480
        %v1033 = vunpack.c.l.b16 %v481
        %v1034 = vunpack.c.h.b16 %v481
        %v1035 = vunpack.c.l.b16 %v482
        %v1036 = vunpack.c.h.b16 %v482
        %v1037 = vunpack.c.l.b16 %v483
        %v1038 = vunpack.c.h.b16 %v483
        %v1039 = vunpack.c.l.b16 %v484
        %v1040 = vunpack.c.h.b16 %v484
        %v1041 = vunpack.c.l.b16 %v485
        %v1042 = vunpack.c.h.b16 %v485
        %v1043 = vunpack.c.l.b16 %v486
        %v1044 = vunpack.c.h.b16 %v486
        %v1045 = vunpack.c.l.b16 %v487
        %v1046 = vunpack.c.h.b16 %v487
        %v1047 = vunpack.c.l.b16 %v488
        %v1048 = vunpack.c.h.b16 %v488
        %v1049 = vunpack.c.l.b16 %v489
        %v1050 = vunpack.c.h.b16 %v489
        %v1051 = vunpack.c.l.b16 %v490
        %v1052 = vunpack.c.h.b16 %v490
        %v1053 = vunpack.c.l.b16 %v491
        %v1054 = vunpack.c.h.b16 %v491
        %v1055 = vunpack.c.l.b16 %v492
        %v1056 = vunpack.c.h.b16 %v492
        %v1057 = vunpack.c.l.b16 %v493
        %v1058 = vunpack.c.h.b16 %v493
        %v1059 = vunpack.c.l.b16 %v494
        %v1060 = vunpack.c.h.b16 %v494
        %v1061 = vunpack.c.l.b16 %v495
        %v1062 = vunpack.c.h.b16 %v495
        %v1063 = vunpack.c.l.b16 %v496
        %v1064 = vunpack.c.h.b16 %v496
        %v1065 = vunpack.c.l.b16 %v497
        %v1066 = vunpack.c.h.b16 %v497
        %v1067 = vunpack.c.l.b16 %v498
        %v1068 = vunpack.c.h.b16 %v498
        %v1069 = vunpack.c.l.b16 %v499
        %v1070 = vunpack.c.h.b16 %v499
        %v1071 = vunpack.c.l.b16 %v500
        %v1072 = vunpack.c.h.b16 %v500
        %v1073 = vunpack.c.l.b16 %v501
        %v1074 = vunpack.c.h.b16 %v501
        %v1075 = vunpack.c.l.b16 %v502
        %v1076 = vunpack.c.h.b16 %v502
        %v1077 = vunpack.c.l.b16 %v503
        %v1078 = vunpack.c.h.b16 %v503
        %v1079 = vunpack.c.l.b16 %v504
        %v1080 = vunpack.c.h.b16 %v504
        %v1081 = vunpack.c.l.b16 %v505
        %v1082 = vunpack.c.h.b16 %v505
        %v1083 = vunpack.c.l.b16 %v506
        %v1084 = vunpack.c.h.b16 %v506
        %v1085 = vunpack.c.l.b16 %v507
        %v1086 = vunpack.c.h.b16 %v507
        %v1087 = vunpack.c.l.b16 %v508
        %v1088 = vunpack.c.h.b16 %v508
        %v1089 = vunpack.c.l.b16 %v509
        %v1090 = vunpack.c.h.b16 %v509
        %v1091 = vunpack.c.l.b16 %v510
        %v1092 = vunpack.c.h.b16 %v510
        %v1093 = vunpack.c.l.b16 %v511
        %v1094 = vunpack.c.h.b16 %v511
        %v1095 = vunpack.c.l.b16 %v512
        %v1096 = vunpack.c.h.b16 %v512
        %v1097 = vunpack.c.l.b16 %v513
        %v1098 = vunpack.c.h.b16 %v513
        %v1099 = vunpack.c.l.b16 %v514
        %v1100 = vunpack.c.h.b16 %v514
        %v1101 = vunpack.c.l.b16 %v515
        %v1102 = vunpack.c.h.b16 %v515
        %v1103 = vunpack.c.l.b16 %v516
        %v1104 = vunpack.c.h.b16 %v516
        %v1105 = vunpack.c.l.b16 %v517
        %v1106 = vunpack.c.h.b16 %v517
        %v1107 = vunpack.c.l.b16 %v518
        %v1108 = vunpack.c.h.b16 %v518
        %v1109 = vunpack.c.l.b16 %v519
        %v1110 = vunpack.c.h.b16 %v519
        %v1111 = vunpack.c.l.b16 %v520
        %v1112 = vunpack.c.h.b16 %v520
        %v1113 = vunpack.c.l.b16 %v521
        %v1114 = vunpack.c.h.b16 %v521
        %v1115 = vunpack.c.l.b16 %v522
        %v1116 = vunpack.c.h.b16 %v522
        %v1117 = vunpack.c.l.b16 %v523
        %v1118 = vunpack.c.h.b16 %v523
        %v1119 = vunpack.c.l.b16 %v524
        %v1120 = vunpack.c.h.b16 %v524
        %v1121 = vunpack.c.l.b16 %v525
        %v1122 = vunpack.c.h.b16 %v525
        %v1123 = vunpack.c.l.b16 %v526
        %v1124 = vunpack.c.h.b16 %v526
        %v1125 = vunpack.c.l.b16 %v527
        %v1126 = vunpack.c.h.b16 %v527
        %v1127 = vunpack.c.l.b16 %v528
        %v1128 = vunpack.c.h.b16 %v528
        %v1129 = vunpack.c.l.b16 %v529
        %v1130 = vunpack.c.h.b16 %v529
        %v1131 = vunpack.c.l.b16 %v530
        %v1132 = vunpack.c.h.b16 %v530
        %v1133 = vunpack.c.l.b16 %v531
        %v1134 = vunpack.c.h.b16 %v531
        %v1135 = vunpack.c.l.b16 %v532
        %v1136 = vunpack.c.h.b16 %v532
        %v1137 = vunpack.c.l.b16 %v533
        %v1138 = vunpack.c.h.b16 %v533
        %v1139 = vunpack.c.l.b16 %v534
        %v1140 = vunpack.c.h.b16 %v534
        %v1141 = vunpack.c.l.b16 %v535
        %v1142 = vunpack.c.h.b16 %v535
        %v1143 = vunpack.c.l.b16 %v536
        %v1144 = vunpack.c.h.b16 %v536
        %v1145 = vunpack.c.l.b16 %v537
        %v1146 = vunpack.c.h.b16 %v537
        %v1147 = vunpack.c.l.b16 %v538
        %v1148 = vunpack.c.h.b16 %v538
        %v1149 = vunpack.c.l.b16 %v539
        %v1150 = vunpack.c.h.b16 %v539
        %v1151 = vunpack.c.l.b16 %v540
        %v1152 = vunpack.c.h.b16 %v540
        %v1153 = vunpack.c.l.b16 %v541
        %v1154 = vunpack.c.h.b16 %v541
        %v1155 = vunpack.c.l.b16 %v542
        %v1156 = vunpack.c.h.b16 %v542
        %v1157 = vunpack.c.l.b16 %v543
        %v1158 = vunpack.c.h.b16 %v543
        %v1159 = vunpack.c.l.b16 %v544
        %v1160 = vunpack.c.h.b16 %v544
        %v1161 = vunpack.c.l.b16 %v545
        %v1162 = vunpack.c.h.b16 %v545
        %v1163 = vunpack.c.l.b16 %v546
        %v1164 = vunpack.c.h.b16 %v546
        %v1165 = vunpack.c.l.b16 %v547
        %v1166 = vunpack.c.h.b16 %v547
        %v1167 = vunpack.c.l.b16 %v548
        %v1168 = vunpack.c.h.b16 %v548
        %v1169 = vunpack.c.l.b16 %v549
        %v1170 = vunpack.c.h.b16 %v549
        %v1171 = vunpack.c.l.b16 %v550
        %v1172 = vunpack.c.h.b16 %v550
        %v1173 = vunpack.c.l.b16 %v551
        %v1174 = vunpack.c.h.b16 %v551
        %v1175 = vunpack.c.l.b16 %v552
        %v1176 = vunpack.c.h.b16 %v552
        %v1177 = vunpack.c.l.b16 %v553
        %v1178 = vunpack.c.h.b16 %v553
        %v1179 = vunpack.c.l.b16 %v554
        %v1180 = vunpack.c.h.b16 %v554
        %v1181 = vunpack.c.l.b16 %v555
        %v1182 = vunpack.c.h.b16 %v555
        %v1183 = vunpack.c.l.b16 %v556
        %v1184 = vunpack.c.h.b16 %v556
        %v1185 = vunpack.c.l.b16 %v557
        %v1186 = vunpack.c.h.b16 %v557
        %v1187 = vunpack.c.l.b16 %v558
        %v1188 = vunpack.c.h.b16 %v558
        %v1189 = vunpack.c.l.b16 %v559
        %v1190 = vunpack.c.h.b16 %v559
        %v1191 = vunpack.c.l.b16 %v560
        %v1192 = vunpack.c.h.b16 %v560
        %v1193 = vunpack.c.l.b16 %v561
        %v1194 = vunpack.c.h.b16 %v561
        %v1195 = vunpack.c.l.b16 %v562
        %v1196 = vunpack.c.h.b16 %v562
        %v1197 = vunpack.c.l.b16 %v563
        %v1198 = vunpack.c.h.b16 %v563
        %v1199 = vunpack.c.l.b16 %v564
        %v1200 = vunpack.c.h.b16 %v564
        %v1201 = vunpack.c.l.b16 %v565
        %v1202 = vunpack.c.h.b16 %v565
        %v1203 = vunpack.c.l.b16 %v566
        %v1204 = vunpack.c.h.b16 %v566
        %v1205 = vunpack.c.l.b16 %v567
        %v1206 = vunpack.c.h.b16 %v567
        %v1207 = vunpack.c.l.b16 %v568
        %v1208 = vunpack.c.h.b16 %v568
        %v1209 = vunpack.c.l.b16 %v569
        %v1210 = vunpack.c.h.b16 %v569
        %v1211 = vunpack.c.l.b16 %v570
        %v1212 = vunpack.c.h.b16 %v570
        %v1213 = vunpack.c.l.b16 %v571
        %v1214 = vunpack.c.h.b16 %v571
        %v1215 = vunpack.c.l.b16 %v572
        %v1216 = vunpack.c.h.b16 %v572
        %v1217 = vunpack.c.l.b16 %v573
        %v1218 = vunpack.c.h.b16 %v573
        %v1219 = vpack.c.b16 %v831, %v827
        %v1220 = vpack.c.b16 %v832, %v828
        %v1221 = vpack.c.b16 %v833, %v829
        %v1222 = vpack.c.b16 %v834, %v830
        %v1223 = vpack.c.b16 %v839, %v835
        %v1224 = vpack.c.b16 %v840, %v836
        %v1225 = vpack.c.b16 %v841, %v837
        %v1226 = vpack.c.b16 %v842, %v838
        %v1227 = vpack.c.b16 %v847, %v843
        %v1228 = vpack.c.b16 %v848, %v844
        %v1229 = vpack.c.b16 %v849, %v845
        %v1230 = vpack.c.b16 %v850, %v846
        %v1231 = vpack.c.b16 %v855, %v851
        %v1232 = vpack.c.b16 %v856, %v852
        %v1233 = vpack.c.b16 %v857, %v853
        %v1234 = vpack.c.b16 %v858, %v854
        %v1235 = vpack.c.b16 %v863, %v859
        %v1236 = vpack.c.b16 %v864, %v860
        %v1237 = vpack.c.b16 %v865, %v861
        %v1238 = vpack.c.b16 %v866, %v862
        %v1239 = vpack.c.b16 %v871, %v867
        %v1240 = vpack.c.b16 %v872, %v868
        %v1241 = vpack.c.b16 %v873, %v869
        %v1242 = vpack.c.b16 %v874, %v870
        %v1243 = vpack.c.b16 %v879, %v875
        %v1244 = vpack.c.b16 %v880, %v876
        %v1245 = vpack.c.b16 %v881, %v877
        %v1246 = vpack.c.b16 %v882, %v878
        %v1247 = vpack.c.b16 %v887, %v883
        %v1248 = vpack.c.b16 %v888, %v884
        %v1249 = vpack.c.b16 %v889, %v885
        %v1250 = vpack.c.b16 %v890, %v886
        %v1251 = vpack.c.b16 %v895, %v891
        %v1252 = vpack.c.b16 %v896, %v892
        %v1253 = vpack.c.b16 %v897, %v893
        %v1254 = vpack.c.b16 %v898, %v894
        %v1255 = vpack.c.b16 %v903, %v899
        %v1256 = vpack.c.b16 %v904, %v900
        %v1257 = vpack.c.b16 %v905, %v901
        %v1258 = vpack.c.b16 %v906, %v902
        %v1259 = vpack.c.b16 %v911, %v907
        %v1260 = vpack.c.b16 %v912, %v908
        %v1261 = vpack.c.b16 %v913, %v909
        %v1262 = vpack.c.b16 %v914, %v910
        %v1263 = vpack.c.b16 %v919, %v915
        %v1264 = vpack.c.b16 %v920, %v916
        %v1265 = vpack.c.b16 %v921, %v917
        %v1266 = vpack.c.b16 %v922, %v918
        %v1267 = vpack.c.b16 %v927, %v923
        %v1268 = vpack.c.b16 %v928, %v924
        %v1269 = vpack.c.b16 %v929, %v925
        %v1270 = vpack.c.b16 %v930, %v926
        %v1271 = vpack.c.b16 %v935, %v931
        %v1272 = vpack.c.b16 %v936, %v932
        %v1273 = vpack.c.b16 %v937, %v933
        %v1274 = vpack.c.b16 %v938, %v934
        %v1275 = vpack.c.b16 %v943, %v939
        %v1276 = vpack.c.b16 %v944, %v940
        %v1277 = vpack.c.b16 %v945, %v941
        %v1278 = vpack.c.b16 %v946, %v942
        %v1279 = vpack.c.b16 %v951, %v947
        %v1280 = vpack.c.b16 %v952, %v948
        %v1281 = vpack.c.b16 %v953, %v949
        %v1282 = vpack.c.b16 %v954, %v950
        %v1283 = vpack.c.b16 %v959, %v955
        %v1284 = vpack.c.b16 %v960, %v956
        %v1285 = vpack.c.b16 %v961, %v957
        %v1286 = vpack.c.b16 %v962, %v958
        %v1287 = vpack.c.b16 %v967, %v963
        %v1288 = vpack.c.b16 %v968, %v964
        %v1289 = vpack.c.b16 %v969, %v965
        %v1290 = vpack.c.b16 %v970, %v966
        %v1291 = vpack.c.b16 %v975, %v971
        %v1292 = vpack.c.b16 %v976, %v972
        %v1293 = vpack.c.b16 %v977, %v973
        %v1294 = vpack.c.b16 %v978, %v974
        %v1295 = vpack.c.b16 %v983, %v979
        %v1296 = vpack.c.b16 %v984, %v980
        %v1297 = vpack.c.b16 %v985, %v981
        %v1298 = vpack.c.b16 %v986, %v982
        %v1299 = vpack.c.b16 %v991, %v987
        %v1300 = vpack.c.b16 %v992, %v988
        %v1301 = vpack.c.b16 %v993, %v989
        %v1302 = vpack.c.b16 %v994, %v990
        %v1303 = vpack.c.b16 %v999, %v995
        %v1304 = vpack.c.b16 %v1000, %v996
        %v1305 = vpack.c.b16 %v1001, %v997
        %v1306 = vpack.c.b16 %v1002, %v998
        %v1307 = vpack.c.b16 %v1007, %v1003
        %v1308 = vpack.c.b16 %v1008, %v1004
        %v1309 = vpack.c.b16 %v1009, %v1005
        %v1310 = vpack.c.b16 %v1010, %v1006
        %v1311 = vpack.c.b16 %v1015, %v1011
        %v1312 = vpack.c.b16 %v1016, %v1012
        %v1313 = vpack.c.b16 %v1017, %v1013
        %v1314 = vpack.c.b16 %v1018, %v1014
        %v1315 = vpack.c.b16 %v1023, %v1019
        %v1316 = vpack.c.b16 %v1024, %v1020
        %v1317 = vpack.c.b16 %v1025, %v1021
        %v1318 = vpack.c.b16 %v1026, %v1022
        %v1319 = vpack.c.b16 %v1031, %v1027
        %v1320 = vpack.c.b16 %v1032, %v1028
        %v1321 = vpack.c.b16 %v1033, %v1029
        %v1322 = vpack.c.b16 %v1034, %v1030
        %v1323 = vpack.c.b16 %v1039, %v1035
        %v1324 = vpack.c.b16 %v1040, %v1036
        %v1325 = vpack.c.b16 %v1041, %v1037
        %v1326 = vpack.c.b16 %v1042, %v1038
        %v1327 = vpack.c.b16 %v1047, %v1043
        %v1328 = vpack.c.b16 %v1048, %v1044
        %v1329 = vpack.c.b16 %v1049, %v1045
        %v1330 = vpack.c.b16 %v1050, %v1046
        %v1331 = vpack.c.b16 %v1055, %v1051
        %v1332 = vpack.c.b16 %v1056, %v1052
        %v1333 = vpack.c.b16 %v1057, %v1053
        %v1334 = vpack.c.b16 %v1058, %v1054
        %v1335 = vpack.c.b16 %v1063, %v1059
        %v1336 = vpack.c.b16 %v1064, %v1060
        %v1337 = vpack.c.b16 %v1065, %v1061
        %v1338 = vpack.c.b16 %v1066, %v1062
        %v1339 = vpack.c.b16 %v1071, %v1067
        %v1340 = vpack.c.b16 %v1072, %v1068
        %v1341 = vpack.c.b16 %v1073, %v1069
        %v1342 = vpack.c.b16 %v1074, %v1070
        %v1343 = vpack.c.b16 %v1079, %v1075
        %v1344 = vpack.c.b16 %v1080, %v1076
        %v1345 = vpack.c.b16 %v1081, %v1077
        %v1346 = vpack.c.b16 %v1082, %v1078
        %v1347 = vpack.c.b16 %v1087, %v1083
        %v1348 = vpack.c.b16 %v1088, %v1084
        %v1349 = vpack.c.b16 %v1089, %v1085
        %v1350 = vpack.c.b16 %v1090, %v1086
        %v1351 = vpack.c.b16 %v1095, %v1091
        %v1352 = vpack.c.b16 %v1096, %v1092
        %v1353 = vpack.c.b16 %v1097, %v1093
        %v1354 = vpack.c.b16 %v1098, %v1094
        %v1355 = vpack.c.b16 %v1103, %v1099
        %v1356 = vpack.c.b16 %v1104, %v1100
        %v1357 = vpack.c.b16 %v1105, %v1101
        %v1358 = vpack.c.b16 %v1106, %v1102
        %v1359 = vpack.c.b16 %v1111, %v1107
        %v1360 = vpack.c.b16 %v1112, %v1108
        %v1361 = vpack.c.b16 %v1113, %v1109
        %v1362 = vpack.c.b16 %v1114, %v1110
        %v1363 = vpack.c.b16 %v1119, %v1115
        %v1364 = vpack.c.b16 %v1120, %v1116
        %v1365 = vpack.c.b16 %v1121, %v1117
        %v1366 = vpack.c.b16 %v1122, %v1118
        %v1367 = vpack.c.b16 %v1127, %v1123
        %v1368 = vpack.c.b16 %v1128, %v1124
        %v1369 = vpack.c.b16 %v1129, %v1125
        %v1370 = vpack.c.b16 %v1130, %v1126
        %v1371 = vpack.c.b16 %v1135, %v1131
        %v1372 = vpack.c.b16 %v1136, %v1132
        %v1373 = vpack.c.b16 %v1137, %v1133
        %v1374 = vpack.c.b16 %v1138, %v1134
        %v1375 = vpack.c.b16 %v1143, %v1139
        %v1376 = vpack.c.b16 %v1144, %v1140
        %v1377 = vpack.c.b16 %v1145, %v1141
        %v1378 = vpack.c.b16 %v1146, %v1142
        %v1379 = vpack.c.b16 %v1151, %v1147
        %v1380 = vpack.c.b16 %v1152, %v1148
        %v1381 = vpack.c.b16 %v1153, %v1149
        %v1382 = vpack.c.b16 %v1154, %v1150
        %v1383 = vpack.c.b16 %v1159, %v1155
        %v1384 = vpack.c.b16 %v1160, %v1156
        %v1385 = vpack.c.b16 %v1161, %v1157
        %v1386 = vpack.c.b16 %v1162, %v1158
        %v1387 = vpack.c.b16 %v1167, %v1163
        %v1388 = vpack.c.b16 %v1168, %v1164
        %v1389 = vpack.c.b16 %v1169, %v1165
        %v1390 = vpack.c.b16 %v1170, %v1166
        %v1391 = vpack.c.b16 %v1175, %v1171
        %v1392 = vpack.c.b16 %v1176, %v1172
        %v1393 = vpack.c.b16 %v1177, %v1173
        %v1394 = vpack.c.b16 %v1178, %v1174
        %v1395 = vpack.c.b16 %v1183, %v1179
        %v1396 = vpack.c.b16 %v1184, %v1180
        %v1397 = vpack.c.b16 %v1185, %v1181
        %v1398 = vpack.c.b16 %v1186, %v1182
        %v1399 = vpack.c.b16 %v1191, %v1187
        %v1400 = vpack.c.b16 %v1192, %v1188
        %v1401 = vpack.c.b16 %v1193, %v1189
        %v1402 = vpack.c.b16 %v1194, %v1190
        %v1403 = vpack.c.b16 %v1199, %v1195
        %v1404 = vpack.c.b16 %v1200, %v1196
        %v1405 = vpack.c.b16 %v1201, %v1197
        %v1406 = vpack.c.b16 %v1202, %v1198
        %v1407 = vpack.c.b16 %v1207, %v1203
        %v1408 = vpack.c.b16 %v1208, %v1204
        %v1409 = vpack.c.b16 %v1209, %v1205
        %v1410 = vpack.c.b16 %v1210, %v1206
        %v1411 = vpack.c.b16 %v1215, %v1211
        %v1412 = vpack.c.b16 %v1216, %v1212
        %v1413 = vpack.c.b16 %v1217, %v1213
        %v1414 = vpack.c.b16 %v1218, %v1214
        %vm1611 = vcmask 130048
        %v1613 = vsel %vm1611, %v624, 0
        %1615 = vmatprep.subr.bf16.mxu0 %v1220
        %1616 = vmatpush1.bf16.msra.mxu0 %v1219
        %1617 = vmatprep.subr.bf16.mxu0 %v1224
        %1618 = vmatpush1.bf16.msra.mxu0 %v1223
        %1619 = vmatprep.subr.bf16.mxu0 %v1228
        %1620 = vmatpush1.bf16.msra.mxu0 %v1227
        %1621 = vmatprep.subr.bf16.mxu0 %v1232
        %1622 = vmatpush1.bf16.msra.mxu0 %v1231
        %1623 = vmatprep.subr.bf16.mxu0 %v1236
        %1624 = vmatpush1.bf16.msra.mxu0 %v1235
        %1625 = vmatprep.subr.bf16.mxu0 %v1240
        %1626 = vmatpush1.bf16.msra.mxu0 %v1239
        %1627 = vmatprep.subr.bf16.mxu0 %v1244
        %1628 = vmatpush1.bf16.msra.mxu0 %v1243
        %1629 = vmatprep.subr.bf16.mxu0 %v1248
        %1630 = vmatpush1.bf16.msra.mxu0 %v1247
        %1631 = vmatprep.subr.bf16.mxu0 %v1252
        %1632 = vmatpush1.bf16.msra.mxu0 %v1251
        %1633 = vmatprep.subr.bf16.mxu0 %v1256
        %1634 = vmatpush1.bf16.msra.mxu0 %v1255
        %1635 = vmatprep.subr.bf16.mxu0 %v1260
        %1636 = vmatpush1.bf16.msra.mxu0 %v1259
        %1637 = vmatprep.subr.bf16.mxu0 %v1264
        %1638 = vmatpush1.bf16.msra.mxu0 %v1263
        %1639 = vmatprep.subr.bf16.mxu0 %v1268
        %1640 = vmatpush1.bf16.msra.mxu0 %v1267
        %1641 = vmatprep.subr.bf16.mxu0 %v1272
        %1642 = vmatpush1.bf16.msra.mxu0 %v1271
        %1643 = vmatprep.subr.bf16.mxu0 %v1276
        %1644 = vmatpush1.bf16.msra.mxu0 %v1275
        %1645 = vmatprep.subr.bf16.mxu0 %v1280
        %1646 = vmatpush1.bf16.msra.mxu0 %v1279
        %1647 = vmatprep.mubr.bf16.mxu0 %v619
        %1648 = vmatmul.mubr.bf16.gmra.mrb[0].mxu0 %v618
        %v1649 = vpop.f32.mrb[0].mxu0
        %v1650 = vadd.f32 %v579, %v1649
        %v1651 = vpop.f32.mrb[0].mxu0
        %v1652 = vadd.f32 %v583, %v1651
        %v1653 = vpop.f32.mrb[0].mxu0
        %v1654 = vadd.f32 %v579, %v1653
        %v1655 = vpop.f32.mrb[0].mxu0
        %v1656 = vadd.f32 %v583, %v1655
        %1657 = vdwg.mxu0
        %1658 = vmatprep.subr.bf16.mxu0 %v1284
        %1659 = vmatpush1.bf16.msra.mxu0 %v1283
        %1660 = vmatprep.subr.bf16.mxu0 %v1288
        %1661 = vmatpush1.bf16.msra.mxu0 %v1287
        %1662 = vmatprep.subr.bf16.mxu0 %v1292
        %1663 = vmatpush1.bf16.msra.mxu0 %v1291
        %1664 = vmatprep.subr.bf16.mxu0 %v1296
        %1665 = vmatpush1.bf16.msra.mxu0 %v1295
        %1666 = vmatprep.subr.bf16.mxu0 %v1300
        %1667 = vmatpush1.bf16.msra.mxu0 %v1299
        %1668 = vmatprep.subr.bf16.mxu0 %v1304
        %1669 = vmatpush1.bf16.msra.mxu0 %v1303
        %1670 = vmatprep.subr.bf16.mxu0 %v1308
        %1671 = vmatpush1.bf16.msra.mxu0 %v1307
        %1672 = vmatprep.subr.bf16.mxu0 %v1312
        %1673 = vmatpush1.bf16.msra.mxu0 %v1311
        %1674 = vmatprep.subr.bf16.mxu0 %v1316
        %1675 = vmatpush1.bf16.msra.mxu0 %v1315
        %1676 = vmatprep.subr.bf16.mxu0 %v1320
        %1677 = vmatpush1.bf16.msra.mxu0 %v1319
        %1678 = vmatprep.subr.bf16.mxu0 %v1324
        %1679 = vmatpush1.bf16.msra.mxu0 %v1323
        %1680 = vmatprep.subr.bf16.mxu0 %v1328
        %1681 = vmatpush1.bf16.msra.mxu0 %v1327
        %1682 = vmatprep.subr.bf16.mxu0 %v1332
        %1683 = vmatpush1.bf16.msra.mxu0 %v1331
        %1684 = vmatprep.subr.bf16.mxu0 %v1336
        %1685 = vmatpush1.bf16.msra.mxu0 %v1335
        %1686 = vmatprep.subr.bf16.mxu0 %v1340
        %1687 = vmatpush1.bf16.msra.mxu0 %v1339
        %1688 = vmatprep.subr.bf16.mxu0 %v1344
        %1689 = vmatpush1.bf16.msra.mxu0 %v1343
        %1690 = vmatprep.mubr.bf16.mxu0 %v621
        %1691 = vmatmul.mubr.bf16.gmra.mrb[0].mxu0 %v620
        %v1692 = vpop.f32.mrb[0].mxu0
        %v1693 = vadd.f32 %v1650, %v1692
        %v1694 = vpop.f32.mrb[0].mxu0
        %v1695 = vadd.f32 %v1652, %v1694
        %v1696 = vpop.f32.mrb[0].mxu0
        %v1697 = vadd.f32 %v1654, %v1696
        %v1698 = vpop.f32.mrb[0].mxu0
        %v1699 = vadd.f32 %v1656, %v1698
        %1700 = vdwg.mxu0
        %1701 = vmatprep.subr.bf16.mxu0 %v1348
        %1702 = vmatpush1.bf16.msra.mxu0 %v1347
        %1703 = vmatprep.subr.bf16.mxu0 %v1352
        %1704 = vmatpush1.bf16.msra.mxu0 %v1351
        %1705 = vmatprep.subr.bf16.mxu0 %v1356
        %1706 = vmatpush1.bf16.msra.mxu0 %v1355
        %1707 = vmatprep.subr.bf16.mxu0 %v1360
        %1708 = vmatpush1.bf16.msra.mxu0 %v1359
        %1709 = vmatprep.subr.bf16.mxu0 %v1364
        %1710 = vmatpush1.bf16.msra.mxu0 %v1363
        %1711 = vmatprep.subr.bf16.mxu0 %v1368
        %1712 = vmatpush1.bf16.msra.mxu0 %v1367
        %1713 = vmatprep.subr.bf16.mxu0 %v1372
        %1714 = vmatpush1.bf16.msra.mxu0 %v1371
        %1715 = vmatprep.subr.bf16.mxu0 %v1376
        %1716 = vmatpush1.bf16.msra.mxu0 %v1375
        %1717 = vmatprep.subr.bf16.mxu0 %v1380
        %1718 = vmatpush1.bf16.msra.mxu0 %v1379
        %1719 = vmatprep.subr.bf16.mxu0 %v1384
        %1720 = vmatpush1.bf16.msra.mxu0 %v1383
        %1721 = vmatprep.subr.bf16.mxu0 %v1388
        %1722 = vmatpush1.bf16.msra.mxu0 %v1387
        %1723 = vmatprep.subr.bf16.mxu0 %v1392
        %1724 = vmatpush1.bf16.msra.mxu0 %v1391
        %1725 = vmatprep.subr.bf16.mxu0 %v1396
        %1726 = vmatpush1.bf16.msra.mxu0 %v1395
        %1727 = vmatprep.subr.bf16.mxu0 %v1400
        %1728 = vmatpush1.bf16.msra.mxu0 %v1399
        %1729 = vmatprep.subr.bf16.mxu0 %v1404
        %1730 = vmatpush1.bf16.msra.mxu0 %v1403
        %1731 = vmatprep.subr.bf16.mxu0 %v1408
        %1732 = vmatpush1.bf16.msra.mxu0 %v1407
        %1733 = vmatprep.mubr.bf16.mxu0 %v623
        %1734 = vmatmul.mubr.bf16.gmra.mrb[0].mxu0 %v622
        %v1735 = vpop.f32.mrb[0].mxu0
        %v1736 = vadd.f32 %v1693, %v1735
        %v1737 = vpop.f32.mrb[0].mxu0
        %v1738 = vadd.f32 %v1695, %v1737
        %v1739 = vpop.f32.mrb[0].mxu0
        %v1740 = vadd.f32 %v1697, %v1739
        %v1741 = vpop.f32.mrb[0].mxu0
        %v1742 = vadd.f32 %v1699, %v1741
        %1743 = vdwg.mxu0
        %1744 = vmatprep.subr.bf16.mxu0 %v1412
        %1745 = vmatpush1.bf16.msra.mxu0 %v1411
        %1746 = vmatprep.subr.bf16.mxu0 0
        %1747 = vmatpush1.bf16.msra.mxu0 0
        %1748 = vmatprep.subr.bf16.mxu0 0
        %1749 = vmatpush1.bf16.msra.mxu0 0
        %1750 = vmatprep.subr.bf16.mxu0 0
        %1751 = vmatpush1.bf16.msra.mxu0 0
        %1752 = vmatprep.subr.bf16.mxu0 0
        %1753 = vmatpush1.bf16.msra.mxu0 0
        %1754 = vmatprep.subr.bf16.mxu0 0
        %1755 = vmatpush1.bf16.msra.mxu0 0
        %1756 = vmatprep.subr.bf16.mxu0 0
        %1757 = vmatpush1.bf16.msra.mxu0 0
        %1758 = vmatprep.subr.bf16.mxu0 0
        %1759 = vmatpush1.bf16.msra.mxu0 0
        %1760 = vmatprep.subr.bf16.mxu0 0
        %1761 = vmatpush1.bf16.msra.mxu0 0
        %1762 = vmatprep.subr.bf16.mxu0 0
        %1763 = vmatpush1.bf16.msra.mxu0 0
        %1764 = vmatprep.subr.bf16.mxu0 0
        %1765 = vmatpush1.bf16.msra.mxu0 0
        %1766 = vmatprep.subr.bf16.mxu0 0
        %1767 = vmatpush1.bf16.msra.mxu0 0
        %1768 = vmatprep.subr.bf16.mxu0 0
        %1769 = vmatpush1.bf16.msra.mxu0 0
        %1770 = vmatprep.subr.bf16.mxu0 0
        %1771 = vmatpush1.bf16.msra.mxu0 0
        %1772 = vmatprep.subr.bf16.mxu0 0
        %1773 = vmatpush1.bf16.msra.mxu0 0
        %1774 = vmatprep.subr.bf16.mxu0 0
        %1775 = vmatpush1.bf16.msra.mxu0 0
        %1776 = vmatprep.mubr.bf16.mxu0 0
        %1777 = vmatmul.mubr.bf16.gmra.mrb[0].mxu0 %v1613
        %v1778 = vpop.f32.mrb[0].mxu0
        %v1779 = vadd.f32 %v1736, %v1778
        %v1780 = vpop.f32.mrb[0].mxu0
        %v1781 = vadd.f32 %v1738, %v1780
        %v1782 = vpop.f32.mrb[0].mxu0
        %v1783 = vadd.f32 %v1740, %v1782
        %v1784 = vpop.f32.mrb[0].mxu0
        %v1785 = vadd.f32 %v1742, %v1784
        %1786 = vdwg.mxu0
        %1787 = vmatprep.subr.bf16.mxu0 %v1222
        %1788 = vmatpush1.bf16.msra.mxu0 %v1221
        %1789 = vmatprep.subr.bf16.mxu0 %v1226
        %1790 = vmatpush1.bf16.msra.mxu0 %v1225
        %1791 = vmatprep.subr.bf16.mxu0 %v1230
        %1792 = vmatpush1.bf16.msra.mxu0 %v1229
        %1793 = vmatprep.subr.bf16.mxu0 %v1234
        %1794 = vmatpush1.bf16.msra.mxu0 %v1233
        %1795 = vmatprep.subr.bf16.mxu0 %v1238
        %1796 = vmatpush1.bf16.msra.mxu0 %v1237
        %1797 = vmatprep.subr.bf16.mxu0 %v1242
        %1798 = vmatpush1.bf16.msra.mxu0 %v1241
        %1799 = vmatprep.subr.bf16.mxu0 %v1246
        %1800 = vmatpush1.bf16.msra.mxu0 %v1245
        %1801 = vmatprep.subr.bf16.mxu0 %v1250
        %1802 = vmatpush1.bf16.msra.mxu0 %v1249
        %1803 = vmatprep.subr.bf16.mxu0 %v1254
        %1804 = vmatpush1.bf16.msra.mxu0 %v1253
        %1805 = vmatprep.subr.bf16.mxu0 %v1258
        %1806 = vmatpush1.bf16.msra.mxu0 %v1257
        %1807 = vmatprep.subr.bf16.mxu0 %v1262
        %1808 = vmatpush1.bf16.msra.mxu0 %v1261
        %1809 = vmatprep.subr.bf16.mxu0 %v1266
        %1810 = vmatpush1.bf16.msra.mxu0 %v1265
        %1811 = vmatprep.subr.bf16.mxu0 %v1270
        %1812 = vmatpush1.bf16.msra.mxu0 %v1269
        %1813 = vmatprep.subr.bf16.mxu0 %v1274
        %1814 = vmatpush1.bf16.msra.mxu0 %v1273
        %1815 = vmatprep.subr.bf16.mxu0 %v1278
        %1816 = vmatpush1.bf16.msra.mxu0 %v1277
        %1817 = vmatprep.subr.bf16.mxu0 %v1282
        %1818 = vmatpush1.bf16.msra.mxu0 %v1281
        %1819 = vmatprep.mubr.bf16.mxu0 %v619
        %1820 = vmatmul.mubr.bf16.gmra.mrb[0].mxu0 %v618
        %v1821 = vpop.f32.mrb[0].mxu0
        %v1822 = vadd.f32 %v587, %v1821
        %v1823 = vpop.f32.mrb[0].mxu0
        %v1824 = vadd.f32 %v591, %v1823
        %v1825 = vpop.f32.mrb[0].mxu0
        %v1826 = vadd.f32 %v587, %v1825
        %v1827 = vpop.f32.mrb[0].mxu0
        %v1828 = vadd.f32 %v591, %v1827
        %1829 = vdwg.mxu0
        %1830 = vmatprep.subr.bf16.mxu0 %v1286
        %1831 = vmatpush1.bf16.msra.mxu0 %v1285
        %1832 = vmatprep.subr.bf16.mxu0 %v1290
        %1833 = vmatpush1.bf16.msra.mxu0 %v1289
        %1834 = vmatprep.subr.bf16.mxu0 %v1294
        %1835 = vmatpush1.bf16.msra.mxu0 %v1293
        %1836 = vmatprep.subr.bf16.mxu0 %v1298
        %1837 = vmatpush1.bf16.msra.mxu0 %v1297
        %1838 = vmatprep.subr.bf16.mxu0 %v1302
        %1839 = vmatpush1.bf16.msra.mxu0 %v1301
        %1840 = vmatprep.subr.bf16.mxu0 %v1306
        %1841 = vmatpush1.bf16.msra.mxu0 %v1305
        %1842 = vmatprep.subr.bf16.mxu0 %v1310
        %1843 = vmatpush1.bf16.msra.mxu0 %v1309
        %1844 = vmatprep.subr.bf16.mxu0 %v1314
        %1845 = vmatpush1.bf16.msra.mxu0 %v1313
        %1846 = vmatprep.subr.bf16.mxu0 %v1318
        %1847 = vmatpush1.bf16.msra.mxu0 %v1317
        %1848 = vmatprep.subr.bf16.mxu0 %v1322
        %1849 = vmatpush1.bf16.msra.mxu0 %v1321
        %1850 = vmatprep.subr.bf16.mxu0 %v1326
        %1851 = vmatpush1.bf16.msra.mxu0 %v1325
        %1852 = vmatprep.subr.bf16.mxu0 %v1330
        %1853 = vmatpush1.bf16.msra.mxu0 %v1329
        %1854 = vmatprep.subr.bf16.mxu0 %v1334
        %1855 = vmatpush1.bf16.msra.mxu0 %v1333
        %1856 = vmatprep.subr.bf16.mxu0 %v1338
        %1857 = vmatpush1.bf16.msra.mxu0 %v1337
        %1858 = vmatprep.subr.bf16.mxu0 %v1342
        %1859 = vmatpush1.bf16.msra.mxu0 %v1341
        %1860 = vmatprep.subr.bf16.mxu0 %v1346
        %1861 = vmatpush1.bf16.msra.mxu0 %v1345
        %1862 = vmatprep.mubr.bf16.mxu0 %v621
        %1863 = vmatmul.mubr.bf16.gmra.mrb[0].mxu0 %v620
        %v1864 = vpop.f32.mrb[0].mxu0
        %v1865 = vadd.f32 %v1822, %v1864
        %v1866 = vpop.f32.mrb[0].mxu0
        %v1867 = vadd.f32 %v1824, %v1866
        %v1868 = vpop.f32.mrb[0].mxu0
        %v1869 = vadd.f32 %v1826, %v1868
        %v1870 = vpop.f32.mrb[0].mxu0
        %v1871 = vadd.f32 %v1828, %v1870
        %1872 = vdwg.mxu0
        %1873 = vmatprep.subr.bf16.mxu0 %v1350
        %1874 = vmatpush1.bf16.msra.mxu0 %v1349
        %1875 = vmatprep.subr.bf16.mxu0 %v1354
        %1876 = vmatpush1.bf16.msra.mxu0 %v1353
        %1877 = vmatprep.subr.bf16.mxu0 %v1358
        %1878 = vmatpush1.bf16.msra.mxu0 %v1357
        %1879 = vmatprep.subr.bf16.mxu0 %v1362
        %1880 = vmatpush1.bf16.msra.mxu0 %v1361
        %1881 = vmatprep.subr.bf16.mxu0 %v1366
        %1882 = vmatpush1.bf16.msra.mxu0 %v1365
        %1883 = vmatprep.subr.bf16.mxu0 %v1370
        %1884 = vmatpush1.bf16.msra.mxu0 %v1369
        %1885 = vmatprep.subr.bf16.mxu0 %v1374
        %1886 = vmatpush1.bf16.msra.mxu0 %v1373
        %1887 = vmatprep.subr.bf16.mxu0 %v1378
        %1888 = vmatpush1.bf16.msra.mxu0 %v1377
        %1889 = vmatprep.subr.bf16.mxu0 %v1382
        %1890 = vmatpush1.bf16.msra.mxu0 %v1381
        %1891 = vmatprep.subr.bf16.mxu0 %v1386
        %1892 = vmatpush1.bf16.msra.mxu0 %v1385
        %1893 = vmatprep.subr.bf16.mxu0 %v1390
        %1894 = vmatpush1.bf16.msra.mxu0 %v1389
        %1895 = vmatprep.subr.bf16.mxu0 %v1394
        %1896 = vmatpush1.bf16.msra.mxu0 %v1393
        %1897 = vmatprep.subr.bf16.mxu0 %v1398
        %1898 = vmatpush1.bf16.msra.mxu0 %v1397
        %1899 = vmatprep.subr.bf16.mxu0 %v1402
        %1900 = vmatpush1.bf16.msra.mxu0 %v1401
        %1901 = vmatprep.subr.bf16.mxu0 %v1406
        %1902 = vmatpush1.bf16.msra.mxu0 %v1405
        %1903 = vmatprep.subr.bf16.mxu0 %v1410
        %1904 = vmatpush1.bf16.msra.mxu0 %v1409
        %1905 = vmatprep.mubr.bf16.mxu0 %v623
        %1906 = vmatmul.mubr.bf16.gmra.mrb[0].mxu0 %v622
        %v1907 = vpop.f32.mrb[0].mxu0
        %v1908 = vadd.f32 %v1865, %v1907
        %v1909 = vpop.f32.mrb[0].mxu0
        %v1910 = vadd.f32 %v1867, %v1909
        %v1911 = vpop.f32.mrb[0].mxu0
        %v1912 = vadd.f32 %v1869, %v1911
        %v1913 = vpop.f32.mrb[0].mxu0
        %v1914 = vadd.f32 %v1871, %v1913
        %1915 = vdwg.mxu0
        %1916 = vmatprep.subr.bf16.mxu0 %v1414
        %1917 = vmatpush1.bf16.msra.mxu0 %v1413
        %1918 = vmatprep.subr.bf16.mxu0 0
        %1919 = vmatpush1.bf16.msra.mxu0 0
        %1920 = vmatprep.subr.bf16.mxu0 0
        %1921 = vmatpush1.bf16.msra.mxu0 0
        %1922 = vmatprep.subr.bf16.mxu0 0
        %1923 = vmatpush1.bf16.msra.mxu0 0
        %1924 = vmatprep.subr.bf16.mxu0 0
        %1925 = vmatpush1.bf16.msra.mxu0 0
        %1926 = vmatprep.subr.bf16.mxu0 0
        %1927 = vmatpush1.bf16.msra.mxu0 0
        %1928 = vmatprep.subr.bf16.mxu0 0
        %1929 = vmatpush1.bf16.msra.mxu0 0
        %1930 = vmatprep.subr.bf16.mxu0 0
        %1931 = vmatpush1.bf16.msra.mxu0 0
        %1932 = vmatprep.subr.bf16.mxu0 0
        %1933 = vmatpush1.bf16.msra.mxu0 0
        %1934 = vmatprep.subr.bf16.mxu0 0
        %1935 = vmatpush1.bf16.msra.mxu0 0
        %1936 = vmatprep.subr.bf16.mxu0 0
        %1937 = vmatpush1.bf16.msra.mxu0 0
        %1938 = vmatprep.subr.bf16.mxu0 0
        %1939 = vmatpush1.bf16.msra.mxu0 0
        %1940 = vmatprep.subr.bf16.mxu0 0
        %1941 = vmatpush1.bf16.msra.mxu0 0
        %1942 = vmatprep.subr.bf16.mxu0 0
        %1943 = vmatpush1.bf16.msra.mxu0 0
        %1944 = vmatprep.subr.bf16.mxu0 0
        %1945 = vmatpush1.bf16.msra.mxu0 0
        %1946 = vmatprep.subr.bf16.mxu0 0
        %1947 = vmatpush1.bf16.msra.mxu0 0
        %1948 = vmatprep.mubr.bf16.mxu0 0
        %1949 = vmatmul.mubr.bf16.gmra.mrb[0].mxu0 %v1613
        %v1950 = vpop.f32.mrb[0].mxu0
        %v1951 = vadd.f32 %v1908, %v1950
        %v1952 = vpop.f32.mrb[0].mxu0
        %v1953 = vadd.f32 %v1910, %v1952
        %v1954 = vpop.f32.mrb[0].mxu0
        %v1955 = vadd.f32 %v1912, %v1954
        %v1956 = vpop.f32.mrb[0].mxu0
        %v1957 = vadd.f32 %v1914, %v1956
        %1958 = vdwg.mxu0
        %v1959 = vmax.f32 %v1779, 0.0
        %v1960 = vmax.f32 %v1781, 0.0
        %v1961 = vmax.f32 %v1951, 0.0
        %v1962 = vmax.f32 %v1953, 0.0
        %v1963 = vmax.f32 %v1783, 0.0
        %v1964 = vmax.f32 %v1785, 0.0
        %v1965 = vmax.f32 %v1955, 0.0
        %v1966 = vmax.f32 %v1957, 0.0
        %v1967 = vpack.c.bf16 %v1963, %v1959
        %v1968 = vpack.c.bf16 %v1964, %v1960
        %v1969 = vpack.c.bf16 %v1965, %v1961
        %v1970 = vpack.c.bf16 %v1966, %v1962
        %v1971 = vld [vmem:[#allocation4] sm:$0xf]
        %v1972 = vld [vmem:[#allocation4 + $0x4] sm:$0xf]
        %v1973 = vld [vmem:[#allocation4 + $0x8] sm:$0xf]
        %v1974 = vld [vmem:[#allocation4 + $0xc] sm:$0xf]
        %v1975 = vld [vmem:[#allocation4 + $0x10] sm:$0xf]
        %v1976 = vld [vmem:[#allocation4 + $0x14] sm:$0xf]
        %v1977 = vld [vmem:[#allocation4 + $0x18] sm:$0xf]
        %v1978 = vld [vmem:[#allocation4 + $0x1c] sm:$0xf]
        %v1979 = vld [vmem:[#allocation4 + $0x20] sm:$0xf]
        %v1980 = vld [vmem:[#allocation4 + $0x24] sm:$0xf]
        %v1981 = vld [vmem:[#allocation4 + $0x28] sm:$0xf]
        %v1982 = vld [vmem:[#allocation4 + $0x2c] sm:$0xf]
        %v1983 = vld [vmem:[#allocation4 + $0x30] sm:$0xf]
        %v1984 = vld [vmem:[#allocation4 + $0x34] sm:$0xf]
        %v1985 = vld [vmem:[#allocation4 + $0x38] sm:$0xf]
        %v1986 = vld [vmem:[#allocation4 + $0x3c] sm:$0xf]
        %v1987 = vld [vmem:[#allocation4 + $0x40] sm:$0xf]
        %v1988 = vld [vmem:[#allocation4 + $0x44] sm:$0xf]
        %v1989 = vld [vmem:[#allocation4 + $0x48] sm:$0xf]
        %v1990 = vld [vmem:[#allocation4 + $0x4c] sm:$0xf]
        %v1991 = vld [vmem:[#allocation4 + $0x50] sm:$0xf]
        %v1992 = vld [vmem:[#allocation4 + $0x54] sm:$0xf]
        %v1993 = vld [vmem:[#allocation4 + $0x58] sm:$0xf]
        %v1994 = vld [vmem:[#allocation4 + $0x5c] sm:$0xf]
        %v1995 = vld [vmem:[#allocation4 + $0x60] sm:$0xf]
        %v1996 = vld [vmem:[#allocation4 + $0x64] sm:$0xf]
        %v1997 = vld [vmem:[#allocation4 + $0x68] sm:$0xf]
        %v1998 = vld [vmem:[#allocation4 + $0x6c] sm:$0xf]
        %v1999 = vld [vmem:[#allocation4 + $0x70] sm:$0xf]
        %v2000 = vld [vmem:[#allocation4 + $0x74] sm:$0xf]
        %v2001 = vld [vmem:[#allocation4 + $0x78] sm:$0xf]
        %v2002 = vld [vmem:[#allocation4 + $0x7c] sm:$0xf]
        %v2003 = vld [vmem:[#allocation4 + $0x80] sm:$0xf]
        %v2004 = vld [vmem:[#allocation4 + $0x84] sm:$0xf]
        %v2005 = vld [vmem:[#allocation4 + $0x88] sm:$0xf]
        %v2006 = vld [vmem:[#allocation4 + $0x8c] sm:$0xf]
        %v2007 = vld [vmem:[#allocation4 + $0x90] sm:$0xf]
        %v2008 = vld [vmem:[#allocation4 + $0x94] sm:$0xf]
        %v2009 = vld [vmem:[#allocation4 + $0x98] sm:$0xf]
        %v2010 = vld [vmem:[#allocation4 + $0x9c] sm:$0xf]
        %v2011 = vld [vmem:[#allocation4 + $0xa0] sm:$0xf]
        %v2012 = vld [vmem:[#allocation4 + $0xa4] sm:$0xf]
        %v2013 = vld [vmem:[#allocation4 + $0xa8] sm:$0xf]
        %v2014 = vld [vmem:[#allocation4 + $0xac] sm:$0xf]
        %v2015 = vld [vmem:[#allocation4 + $0xb0] sm:$0xf]
        %v2016 = vld [vmem:[#allocation4 + $0xb4] sm:$0xf]
        %v2017 = vld [vmem:[#allocation4 + $0xb8] sm:$0xf]
        %v2018 = vld [vmem:[#allocation4 + $0xbc] sm:$0xf]
        %v2019 = vld [vmem:[#allocation4 + $0xc0] sm:$0xf]
        %v2020 = vld [vmem:[#allocation4 + $0xc4] sm:$0xf]
        %v2021 = vld [vmem:[#allocation4 + $0xc8] sm:$0xf]
        %v2022 = vld [vmem:[#allocation4 + $0xcc] sm:$0xf]
        %v2023 = vld [vmem:[#allocation4 + $0xd0] sm:$0xf]
        %v2024 = vld [vmem:[#allocation4 + $0xd4] sm:$0xf]
        %v2025 = vld [vmem:[#allocation4 + $0xd8] sm:$0xf]
        %v2026 = vld [vmem:[#allocation4 + $0xdc] sm:$0xf]
        %v2027 = vld [vmem:[#allocation4 + $0xe0] sm:$0xf]
        %v2028 = vld [vmem:[#allocation4 + $0xe4] sm:$0xf]
        %v2029 = vld [vmem:[#allocation4 + $0xe8] sm:$0xf]
        %v2030 = vld [vmem:[#allocation4 + $0xec] sm:$0xf]
        %v2031 = vld [vmem:[#allocation4 + $0xf0] sm:$0xf]
        %v2032 = vld [vmem:[#allocation4 + $0xf4] sm:$0xf]
        %v2033 = vld [vmem:[#allocation4 + $0xf8] sm:$0xf]
        %v2034 = vld [vmem:[#allocation4 + $0xfc] sm:$0xf]
        %v2035 = vld [vmem:[%s4] sm:$0x1]
        %v2037 = vlaneseq
        %v2038 = vshrl.u32 %v2037, 7
        %v2039 = vsub.s32 0, %v2038
        %v2040 = vrot.slane %v2035, %v2039
        %v2106 = vunpack.c.l.b16 %v1971
        %v2107 = vunpack.c.l.b16 %v1972
        %v2108 = vunpack.c.l.b16 %v1973
        %v2109 = vunpack.c.l.b16 %v1974
        %v2110 = vunpack.c.l.b16 %v1975
        %v2111 = vunpack.c.l.b16 %v1976
        %v2112 = vunpack.c.l.b16 %v1977
        %v2113 = vunpack.c.l.b16 %v1978
        %v2114 = vunpack.c.l.b16 %v1979
        %v2115 = vunpack.c.l.b16 %v1980
        %v2116 = vunpack.c.l.b16 %v1981
        %v2117 = vunpack.c.l.b16 %v1982
        %v2118 = vunpack.c.l.b16 %v1983
        %v2119 = vunpack.c.l.b16 %v1984
        %v2120 = vunpack.c.l.b16 %v1985
        %v2121 = vunpack.c.l.b16 %v1986
        %v2122 = vunpack.c.l.b16 %v1987
        %v2123 = vunpack.c.l.b16 %v1988
        %v2124 = vunpack.c.l.b16 %v1989
        %v2125 = vunpack.c.l.b16 %v1990
        %v2126 = vunpack.c.l.b16 %v1991
        %v2127 = vunpack.c.l.b16 %v1992
        %v2128 = vunpack.c.l.b16 %v1993
        %v2129 = vunpack.c.l.b16 %v1994
        %v2130 = vunpack.c.l.b16 %v1995
        %v2131 = vunpack.c.l.b16 %v1996
        %v2132 = vunpack.c.l.b16 %v1997
        %v2133 = vunpack.c.l.b16 %v1998
        %v2134 = vunpack.c.l.b16 %v1999
        %v2135 = vunpack.c.l.b16 %v2000
        %v2136 = vunpack.c.l.b16 %v2001
        %v2137 = vunpack.c.l.b16 %v2002
        %v2138 = vunpack.c.l.b16 %v2003
        %v2139 = vunpack.c.l.b16 %v2004
        %v2140 = vunpack.c.l.b16 %v2005
        %v2141 = vunpack.c.l.b16 %v2006
        %v2142 = vunpack.c.l.b16 %v2007
        %v2143 = vunpack.c.l.b16 %v2008
        %v2144 = vunpack.c.l.b16 %v2009
        %v2145 = vunpack.c.l.b16 %v2010
        %v2146 = vunpack.c.l.b16 %v2011
        %v2147 = vunpack.c.l.b16 %v2012
        %v2148 = vunpack.c.l.b16 %v2013
        %v2149 = vunpack.c.l.b16 %v2014
        %v2150 = vunpack.c.l.b16 %v2015
        %v2151 = vunpack.c.l.b16 %v2016
        %v2152 = vunpack.c.l.b16 %v2017
        %v2153 = vunpack.c.l.b16 %v2018
        %v2154 = vunpack.c.l.b16 %v2019
        %v2155 = vunpack.c.l.b16 %v2020
        %v2156 = vunpack.c.l.b16 %v2021
        %v2157 = vunpack.c.l.b16 %v2022
        %v2158 = vunpack.c.l.b16 %v2023
        %v2159 = vunpack.c.l.b16 %v2024
        %v2160 = vunpack.c.l.b16 %v2025
        %v2161 = vunpack.c.l.b16 %v2026
        %v2162 = vunpack.c.l.b16 %v2027
        %v2163 = vunpack.c.l.b16 %v2028
        %v2164 = vunpack.c.l.b16 %v2029
        %v2165 = vunpack.c.l.b16 %v2030
        %v2166 = vunpack.c.l.b16 %v2031
        %v2167 = vunpack.c.l.b16 %v2032
        %v2168 = vunpack.c.l.b16 %v2033
        %v2169 = vunpack.c.l.b16 %v2034
        %v2170 = vpack.c.b16 %v2107, %v2106
        %v2171 = vpack.c.b16 %v2109, %v2108
        %v2172 = vpack.c.b16 %v2111, %v2110
        %v2173 = vpack.c.b16 %v2113, %v2112
        %v2174 = vpack.c.b16 %v2115, %v2114
        %v2175 = vpack.c.b16 %v2117, %v2116
        %v2176 = vpack.c.b16 %v2119, %v2118
        %v2177 = vpack.c.b16 %v2121, %v2120
        %v2178 = vpack.c.b16 %v2123, %v2122
        %v2179 = vpack.c.b16 %v2125, %v2124
        %v2180 = vpack.c.b16 %v2127, %v2126
        %v2181 = vpack.c.b16 %v2129, %v2128
        %v2182 = vpack.c.b16 %v2131, %v2130
        %v2183 = vpack.c.b16 %v2133, %v2132
        %v2184 = vpack.c.b16 %v2135, %v2134
        %v2185 = vpack.c.b16 %v2137, %v2136
        %v2186 = vpack.c.b16 %v2139, %v2138
        %v2187 = vpack.c.b16 %v2141, %v2140
        %v2188 = vpack.c.b16 %v2143, %v2142
        %v2189 = vpack.c.b16 %v2145, %v2144
        %v2190 = vpack.c.b16 %v2147, %v2146
        %v2191 = vpack.c.b16 %v2149, %v2148
        %v2192 = vpack.c.b16 %v2151, %v2150
        %v2193 = vpack.c.b16 %v2153, %v2152
        %v2194 = vpack.c.b16 %v2155, %v2154
        %v2195 = vpack.c.b16 %v2157, %v2156
        %v2196 = vpack.c.b16 %v2159, %v2158
        %v2197 = vpack.c.b16 %v2161, %v2160
        %v2198 = vpack.c.b16 %v2163, %v2162
        %v2199 = vpack.c.b16 %v2165, %v2164
        %v2200 = vpack.c.b16 %v2167, %v2166
        %v2201 = vpack.c.b16 %v2169, %v2168
        %2234 = vmatprep.subr.bf16.mxu0 0
        %2235 = vmatpush1.bf16.msra.mxu0 %v2170
        %2236 = vmatprep.subr.bf16.mxu0 0
        %2237 = vmatpush1.bf16.msra.mxu0 %v2171
        %2238 = vmatprep.subr.bf16.mxu0 0
        %2239 = vmatpush1.bf16.msra.mxu0 %v2172
        %2240 = vmatprep.subr.bf16.mxu0 0
        %2241 = vmatpush1.bf16.msra.mxu0 %v2173
        %2242 = vmatprep.subr.bf16.mxu0 0
        %2243 = vmatpush1.bf16.msra.mxu0 %v2174
        %2244 = vmatprep.subr.bf16.mxu0 0
        %2245 = vmatpush1.bf16.msra.mxu0 %v2175
        %2246 = vmatprep.subr.bf16.mxu0 0
        %2247 = vmatpush1.bf16.msra.mxu0 %v2176
        %2248 = vmatprep.subr.bf16.mxu0 0
        %2249 = vmatpush1.bf16.msra.mxu0 %v2177
        %2250 = vmatprep.subr.bf16.mxu0 0
        %2251 = vmatpush1.bf16.msra.mxu0 %v2178
        %2252 = vmatprep.subr.bf16.mxu0 0
        %2253 = vmatpush1.bf16.msra.mxu0 %v2179
        %2254 = vmatprep.subr.bf16.mxu0 0
        %2255 = vmatpush1.bf16.msra.mxu0 %v2180
        %2256 = vmatprep.subr.bf16.mxu0 0
        %2257 = vmatpush1.bf16.msra.mxu0 %v2181
        %2258 = vmatprep.subr.bf16.mxu0 0
        %2259 = vmatpush1.bf16.msra.mxu0 %v2182
        %2260 = vmatprep.subr.bf16.mxu0 0
        %2261 = vmatpush1.bf16.msra.mxu0 %v2183
        %2262 = vmatprep.subr.bf16.mxu0 0
        %2263 = vmatpush1.bf16.msra.mxu0 %v2184
        %2264 = vmatprep.subr.bf16.mxu0 0
        %2265 = vmatpush1.bf16.msra.mxu0 %v2185
        %2266 = vmatprep.mubr.bf16.mxu0 %v1968
        %2267 = vmatmul.mubr.bf16.gmra.mrb[0].mxu0 %v1967
        %v2268 = vpop.f32.mrb[0].mxu0
        %v2269 = vadd.f32 %v2040, %v2268
        %v2270 = vpop.f32.mrb[0].mxu0
        %v2271 = vpop.f32.mrb[0].mxu0
        %v2272 = vadd.f32 %v2040, %v2271
        %v2273 = vpop.f32.mrb[0].mxu0
        %2274 = vdwg.mxu0
        %2275 = vmatprep.subr.bf16.mxu0 0
        %2276 = vmatpush1.bf16.msra.mxu0 %v2186
        %2277 = vmatprep.subr.bf16.mxu0 0
        %2278 = vmatpush1.bf16.msra.mxu0 %v2187
        %2279 = vmatprep.subr.bf16.mxu0 0
        %2280 = vmatpush1.bf16.msra.mxu0 %v2188
        %2281 = vmatprep.subr.bf16.mxu0 0
        %2282 = vmatpush1.bf16.msra.mxu0 %v2189
        %2283 = vmatprep.subr.bf16.mxu0 0
        %2284 = vmatpush1.bf16.msra.mxu0 %v2190
        %2285 = vmatprep.subr.bf16.mxu0 0
        %2286 = vmatpush1.bf16.msra.mxu0 %v2191
        %2287 = vmatprep.subr.bf16.mxu0 0
        %2288 = vmatpush1.bf16.msra.mxu0 %v2192
        %2289 = vmatprep.subr.bf16.mxu0 0
        %2290 = vmatpush1.bf16.msra.mxu0 %v2193
        %2291 = vmatprep.subr.bf16.mxu0 0
        %2292 = vmatpush1.bf16.msra.mxu0 %v2194
        %2293 = vmatprep.subr.bf16.mxu0 0
        %2294 = vmatpush1.bf16.msra.mxu0 %v2195
        %2295 = vmatprep.subr.bf16.mxu0 0
        %2296 = vmatpush1.bf16.msra.mxu0 %v2196
        %2297 = vmatprep.subr.bf16.mxu0 0
        %2298 = vmatpush1.bf16.msra.mxu0 %v2197
        %2299 = vmatprep.subr.bf16.mxu0 0
        %2300 = vmatpush1.bf16.msra.mxu0 %v2198
        %2301 = vmatprep.subr.bf16.mxu0 0
        %2302 = vmatpush1.bf16.msra.mxu0 %v2199
        %2303 = vmatprep.subr.bf16.mxu0 0
        %2304 = vmatpush1.bf16.msra.mxu0 %v2200
        %2305 = vmatprep.subr.bf16.mxu0 0
        %2306 = vmatpush1.bf16.msra.mxu0 %v2201
        %2307 = vmatprep.mubr.bf16.mxu0 %v1970
        %2308 = vmatmul.mubr.bf16.gmra.mrb[0].mxu0 %v1969
        %v2309 = vpop.f32.mrb[0].mxu0
        %v2310 = vadd.f32 %v2269, %v2309
        %v2311 = vpop.f32.mrb[0].mxu0
        %v2312 = vpop.f32.mrb[0].mxu0
        %v2313 = vadd.f32 %v2272, %v2312
        %v2314 = vpop.f32.mrb[0].mxu0
        %2315 = vdwg.mxu0
        %v2316 = vmax.f32 %v2310, 0.0
        %v2317 = vmax.f32 %v2313, 0.0
        %v2318 = vpack.c.bf16 %v2317, %v2316
        %v2319 = vld [vmem:[%s5] sm:$0xf]
        %v2320 = vld [vmem:[%s5 + $0x4] sm:$0xf]
        %v2321 = vld [vmem:[%s5 + $0x8] sm:$0xf]
        %v2322 = vld [vmem:[%s5 + $0xc] sm:$0xf]
        %v2323 = vld [vmem:[%s5 + $0x10] sm:$0xf]
        %v2324 = vld [vmem:[%s5 + $0x14] sm:$0xf]
        %v2325 = vld [vmem:[%s5 + $0x18] sm:$0xf]
        %v2326 = vld [vmem:[%s5 + $0x1c] sm:$0xf]
        %v2327 = vld [vmem:[%s5 + $0x20] sm:$0xf]
        %v2328 = vld [vmem:[%s5 + $0x24] sm:$0xf]
        %v2329 = vld [vmem:[%s5 + $0x28] sm:$0xf]
        %v2330 = vld [vmem:[%s5 + $0x2c] sm:$0xf]
        %v2331 = vld [vmem:[%s5 + $0x30] sm:$0xf]
        %v2332 = vld [vmem:[%s5 + $0x34] sm:$0xf]
        %v2333 = vld [vmem:[%s5 + $0x38] sm:$0xf]
        %v2334 = vld [vmem:[%s5 + $0x3c] sm:$0xf]
        %v2335 = vld [vmem:[%s6] sm:$0x1]
        %v2337 = vlaneseq
        %v2338 = vshrl.u32 %v2337, 7
        %v2339 = vsub.s32 0, %v2338
        %v2340 = vrot.slane %v2335, %v2339
        %v2358 = vunpack.c.l.b16 %v2319
        %v2359 = vunpack.c.l.b16 %v2320
        %v2360 = vunpack.c.l.b16 %v2321
        %v2361 = vunpack.c.l.b16 %v2322
        %v2362 = vunpack.c.l.b16 %v2323
        %v2363 = vunpack.c.l.b16 %v2324
        %v2364 = vunpack.c.l.b16 %v2325
        %v2365 = vunpack.c.l.b16 %v2326
        %v2366 = vunpack.c.l.b16 %v2327
        %v2367 = vunpack.c.l.b16 %v2328
        %v2368 = vunpack.c.l.b16 %v2329
        %v2369 = vunpack.c.l.b16 %v2330
        %v2370 = vunpack.c.l.b16 %v2331
        %v2371 = vunpack.c.l.b16 %v2332
        %v2372 = vunpack.c.l.b16 %v2333
        %v2373 = vunpack.c.l.b16 %v2334
        %v2374 = vpack.c.b16 %v2359, %v2358
        %v2375 = vpack.c.b16 %v2361, %v2360
        %v2376 = vpack.c.b16 %v2363, %v2362
        %v2377 = vpack.c.b16 %v2365, %v2364
        %v2378 = vpack.c.b16 %v2367, %v2366
        %v2379 = vpack.c.b16 %v2369, %v2368
        %v2380 = vpack.c.b16 %v2371, %v2370
        %v2381 = vpack.c.b16 %v2373, %v2372
        %2390 = vmatprep.subr.bf16.mxu0 0
        %2391 = vmatpush1.bf16.msra.mxu0 %v2374
        %2392 = vmatprep.subr.bf16.mxu0 0
        %2393 = vmatpush1.bf16.msra.mxu0 %v2375
        %2394 = vmatprep.subr.bf16.mxu0 0
        %2395 = vmatpush1.bf16.msra.mxu0 %v2376
        %2396 = vmatprep.subr.bf16.mxu0 0
        %2397 = vmatpush1.bf16.msra.mxu0 %v2377
        %2398 = vmatprep.subr.bf16.mxu0 0
        %2399 = vmatpush1.bf16.msra.mxu0 %v2378
        %2400 = vmatprep.subr.bf16.mxu0 0
        %2401 = vmatpush1.bf16.msra.mxu0 %v2379
        %2402 = vmatprep.subr.bf16.mxu0 0
        %2403 = vmatpush1.bf16.msra.mxu0 %v2380
        %2404 = vmatprep.subr.bf16.mxu0 0
        %2405 = vmatpush1.bf16.msra.mxu0 %v2381
        %2406 = vmatprep.subr.bf16.mxu0 0
        %2407 = vmatpush1.bf16.msra.mxu0 0
        %2408 = vmatprep.subr.bf16.mxu0 0
        %2409 = vmatpush1.bf16.msra.mxu0 0
        %2410 = vmatprep.subr.bf16.mxu0 0
        %2411 = vmatpush1.bf16.msra.mxu0 0
        %2412 = vmatprep.subr.bf16.mxu0 0
        %2413 = vmatpush1.bf16.msra.mxu0 0
        %2414 = vmatprep.subr.bf16.mxu0 0
        %2415 = vmatpush1.bf16.msra.mxu0 0
        %2416 = vmatprep.subr.bf16.mxu0 0
        %2417 = vmatpush1.bf16.msra.mxu0 0
        %2418 = vmatprep.subr.bf16.mxu0 0
        %2419 = vmatpush1.bf16.msra.mxu0 0
        %2420 = vmatprep.subr.bf16.mxu0 0
        %2421 = vmatpush1.bf16.msra.mxu0 0
        %2422 = vmatprep.mubr.bf16.mxu0 0
        %2423 = vmatmul.mubr.bf16.gmra.mrb[0].mxu0 %v2318
        %v2424 = vpop.f32.mrb[0].mxu0
        %v2425 = vadd.f32 %v2340, %v2424
        %v2426 = vpop.f32.mrb[0].mxu0
        %v2427 = vpop.f32.mrb[0].mxu0
        %v2428 = vadd.f32 %v2340, %v2427
        %v2429 = vpop.f32.mrb[0].mxu0
        %2430 = vdwg.mxu0
        %v2431 = vmax.f32 %v2425, 0.0
        %v2432 = vmax.f32 %v2428, 0.0
        %v2433 = vpack.c.bf16 %v2432, %v2431
        %v2434 = vld [vmem:[%s7] sm:$0xf]
        %v2435 = vld [vmem:[%s7 + $0x4] sm:$0xf]
        %v2436 = vld [vmem:[%s7 + $0x8] sm:$0xf]
        %v2437 = vld [vmem:[%s7 + $0xc] sm:$0xf]
        %v2438 = vld [vmem:[%s7 + $0x10] sm:$0xf]
        %v2439 = vld [vmem:[%s7 + $0x14] sm:$0xf]
        %v2440 = vld [vmem:[%s7 + $0x18] sm:$0xf]
        %v2441 = vld [vmem:[%s7 + $0x1c] sm:$0xf]
        %v2442 = vld [vmem:[%s7 + $0x20] sm:$0xf]
        %v2443 = vld [vmem:[%s7 + $0x24] sm:$0xf]
        %v2444 = vld [vmem:[%s7 + $0x28] sm:$0xf]
        %v2445 = vld [vmem:[%s7 + $0x2c] sm:$0xf]
        %v2446 = vld [vmem:[%s7 + $0x30] sm:$0xf]
        %v2447 = vld [vmem:[%s7 + $0x34] sm:$0xf]
        %v2448 = vld [vmem:[%s7 + $0x38] sm:$0xf]
        %v2449 = vld [vmem:[%s7 + $0x3c] sm:$0xf]
        %v2450 = vld [vmem:[%s8] sm:$0x1]
        %v2452 = vlaneseq
        %v2453 = vshrl.u32 %v2452, 7
        %v2454 = vsub.s32 0, %v2453
        %v2455 = vrot.slane %v2450, %v2454
        %v2473 = vunpack.c.l.b16 %v2434
        %v2474 = vunpack.c.l.b16 %v2435
        %v2475 = vunpack.c.l.b16 %v2436
        %v2476 = vunpack.c.l.b16 %v2437
        %v2477 = vunpack.c.l.b16 %v2438
        %v2478 = vunpack.c.l.b16 %v2439
        %v2479 = vunpack.c.l.b16 %v2440
        %v2480 = vunpack.c.l.b16 %v2441
        %v2481 = vunpack.c.l.b16 %v2442
        %v2482 = vunpack.c.l.b16 %v2443
        %v2483 = vunpack.c.l.b16 %v2444
        %v2484 = vunpack.c.l.b16 %v2445
        %v2485 = vunpack.c.l.b16 %v2446
        %v2486 = vunpack.c.l.b16 %v2447
        %v2487 = vunpack.c.l.b16 %v2448
        %v2488 = vunpack.c.l.b16 %v2449
        %v2489 = vpack.c.b16 %v2474, %v2473
        %v2490 = vpack.c.b16 %v2476, %v2475
        %v2491 = vpack.c.b16 %v2478, %v2477
        %v2492 = vpack.c.b16 %v2480, %v2479
        %v2493 = vpack.c.b16 %v2482, %v2481
        %v2494 = vpack.c.b16 %v2484, %v2483
        %v2495 = vpack.c.b16 %v2486, %v2485
        %v2496 = vpack.c.b16 %v2488, %v2487
        %2505 = vmatprep.subr.bf16.mxu0 0
        %2506 = vmatpush1.bf16.msra.mxu0 %v2489
        %2507 = vmatprep.subr.bf16.mxu0 0
        %2508 = vmatpush1.bf16.msra.mxu0 %v2490
        %2509 = vmatprep.subr.bf16.mxu0 0
        %2510 = vmatpush1.bf16.msra.mxu0 %v2491
        %2511 = vmatprep.subr.bf16.mxu0 0
        %2512 = vmatpush1.bf16.msra.mxu0 %v2492
        %2513 = vmatprep.subr.bf16.mxu0 0
        %2514 = vmatpush1.bf16.msra.mxu0 %v2493
        %2515 = vmatprep.subr.bf16.mxu0 0
        %2516 = vmatpush1.bf16.msra.mxu0 %v2494
        %2517 = vmatprep.subr.bf16.mxu0 0
        %2518 = vmatpush1.bf16.msra.mxu0 %v2495
        %2519 = vmatprep.subr.bf16.mxu0 0
        %2520 = vmatpush1.bf16.msra.mxu0 %v2496
        %2521 = vmatprep.subr.bf16.mxu0 0
        %2522 = vmatpush1.bf16.msra.mxu0 0
        %2523 = vmatprep.subr.bf16.mxu0 0
        %2524 = vmatpush1.bf16.msra.mxu0 0
        %2525 = vmatprep.subr.bf16.mxu0 0
        %2526 = vmatpush1.bf16.msra.mxu0 0
        %2527 = vmatprep.subr.bf16.mxu0 0
        %2528 = vmatpush1.bf16.msra.mxu0 0
        %2529 = vmatprep.subr.bf16.mxu0 0
        %2530 = vmatpush1.bf16.msra.mxu0 0
        %2531 = vmatprep.subr.bf16.mxu0 0
        %2532 = vmatpush1.bf16.msra.mxu0 0
        %2533 = vmatprep.subr.bf16.mxu0 0
        %2534 = vmatpush1.bf16.msra.mxu0 0
        %2535 = vmatprep.subr.bf16.mxu0 0
        %2536 = vmatpush1.bf16.msra.mxu0 0
        %2537 = vmatprep.mubr.bf16.mxu0 0
        %2538 = vmatmul.mubr.bf16.gmra.mrb[0].mxu0 %v2433
        %v2539 = vpop.f32.mrb[0].mxu0
        %v2540 = vadd.f32 %v2455, %v2539
        %v2541 = vpop.f32.mrb[0].mxu0
        %v2542 = vpop.f32.mrb[0].mxu0
        %v2543 = vadd.f32 %v2455, %v2542
        %v2544 = vpop.f32.mrb[0].mxu0
        %2545 = vdwg.mxu0
        %v2546 = vlaneseq
        %v2547 = vand.u32 %v2546, 127
        %vm2548 = vcmp.lt.s32.totalorder %v2547, 10
        %v2549 = vsel %vm2548, %v2540, -1e+30
        %v2550 = vsel %vm2548, %v2543, -1e+30
        %2551 = vmax.xlane.f32.xlu0 %v2549
        %v2552 = vpop.xlane.xlu0 %2551
        %2553 = vmax.xlane.f32.xlu0 %v2550
        %v2554 = vpop.xlane.xlu0 %2553
        %v2555 = vsub.f32 %v2549, %v2552
        %v2556 = vsub.f32 %v2550, %v2554
        %v2557 = vmul.f32 %v2555, 1.442695
        %v2558 = vpow.pop %v2557
        %v2559 = vmul.f32 %v2556, 1.442695
        %v2560 = vpow.pop %v2559
        %2561 = vadd.xlane.f32.xlu0 %v2558
        %v2562 = vpop.xlane.xlu0 %2561
        %2563 = vadd.xlane.f32.xlu0 %v2560
        %v2564 = vpop.xlane.xlu0 %2563
        %v2565 = vlog2.pop %v2562
        %v2566 = vmul.f32 %v2565, 0.6931472
        %v2567 = vlog2.pop %v2564
        %v2568 = vmul.f32 %v2567, 0.6931472
        %v2569 = vsub.f32 %v2555, %v2566
        %v2570 = vsub.f32 %v2556, %v2568
        %2571 = vst [vmem:[%s367] sm:$0xff] %v2569
        %2572 = vst [vmem:[%s367 + $0x8] sm:$0xff] %v2570
        %s2573 = smul.u32 2, %s22
        %p2574 = scmp.lt.s32.totalorder %s2573, 3
        %s2575 = scalar_select %p2574, %s2573, 3
        %s2576 = smul.addr %s2575, 8
        %s2577 = scalar_lea.vmem %s9, %s2576
        // Predicated region
        $region65: #{splitnn_forward.1} parent=55 // pred_check
          %p2578 = pneg %p234
        $region66: #{splitnn_forward.1} parent=55 // pred_check_branch
          %2580 = sbr.rel (%p2578) target = $region68
        $region67: #{splitnn_forward.1} parent=55 // pred_region
          %s2581 = smul.u32 2, %s22
        $region68: #{splitnn_forward.1} parent=55 // pred_fallthru
          _
      $region56: #{splitnn_forward.1} parent=5 // pred_fallthru
        _
      %p2582 = scmp.le.s32.totalorder 2, %s17
      // Predicated region
      $region69: #{splitnn_forward.1} parent=5 // pred_check
        %p2583 = pneg %p2582
      $region70: #{splitnn_forward.1} parent=5 // pred_check_branch
        %2585 = sbr.rel (%p2583) target = $region72
      $region71: #{splitnn_forward.1} parent=5 // pred_region
        %s2586 = ssub.s32 %s17, 2
        // Predicated region
        $region73: #{splitnn_forward.1} parent=71 // pred_check
          %p2587 = pneg %p240
        $region74: #{splitnn_forward.1} parent=71 // pred_check_branch
          %2589 = sbr.rel (%p2587) target = $region76
        $region75: #{splitnn_forward.1} parent=71 // pred_region
          %s2590 = smul.u32 2, %s23
          %p2591 = scmp.lt.s32.totalorder %s2590, 3
          %s2592 = scalar_select %p2591, %s2590, 3
          %s2593 = smul.addr %s2592, 8
          %s2594 = scalar_lea.vmem %s9, %s2593
        $region76: #{splitnn_forward.1} parent=71 // pred_fallthru
          _
      $region72: #{splitnn_forward.1} parent=5 // pred_fallthru
        _
    $region6: #{splitnn_forward.1} parent=1 // loop_footer
      %s21 = sadd.s32 1, %s17
    $region7: #{splitnn_forward.1} parent=1 // loop_footer_branch
      %16 = sbr.rel target = $region3
    $region8: #{splitnn_forward.1} parent=1 // loop_exit
      _
    %2595 = vsyncpa [#allocation3], 1
    %s2596 = scalar_lea.sflag [#allocation3], 1
    %2597 = vsyncpa %s2596, 1
    %2598 = vsyncpa [#allocation5], 1

</llo_original>
